<compile_context>
chip_gen: v7x
topology: tpu7x:2x2x1
jax: 0.10.0
libtpu: 0.0.40
codegen_flags: <defaults>
</compile_context>

<pallas_src>
import functools

import jax
import jax.numpy as jnp
from jax import lax
from jax.experimental import pallas as pl
from jax.experimental.pallas import tpu as pltpu


def _lstm_policy_kernel(x_ref, h0_ref, c0_ref,
                        wih_ref, whh_ref, b_ref,
                        wfc_ref, bfc_ref,
                        out_ref, hn_ref, cn_ref,
                        gx_ref, hseq_ref):
  """Fused LSTM + FC + tanh for one padded batch chunk (BC = 8 rows).

  x_ref   : (T*BC, D)   time-major-flattened state sequence for this chunk
  h0_ref  : (BC, H)     initial hidden
  c0_ref  : (BC, H)     initial cell
  wih_ref : (D, 4H)     input->gates weights (transposed, gate order i,f,g,o)
  whh_ref : (H, 4H)     hidden->gates weights (transposed)
  b_ref   : (1, 4H)     combined bias (b_ih + b_hh)
  wfc_ref : (H, A)      fc weight (transposed)
  bfc_ref : (1, A)      fc bias
  out_ref : (T*BC, A)   tanh(fc(lstm_out)), time-major-flattened
  hn_ref  : (BC, H)     final hidden
  cn_ref  : (BC, H)     final cell
  gx_ref  : (T*BC, 4H)  VMEM scratch: precomputed input-projection gates
  hseq_ref: (T*BC, H)   VMEM scratch: per-step hidden states
  """
  BC, H = h0_ref.shape              # BC == 8 (full f32 sublane tile)
  TB = x_ref.shape[0]
  T = TB // BC

  # --- 1. Hoisted input projection: ONE MXU matmul over the whole chunk's
  #        sequence, fused bias folded in.  No recurrent dependency, so the
  #        scheduler can overlap it with the start of the recurrence.
  gx_ref[...] = (
      jnp.dot(x_ref[...], wih_ref[...], preferred_element_type=jnp.float32)
      + b_ref[...])

  # --- 2. Serial recurrence, fully unrolled (T static & small).  Only
  #        h @ W_hh + gate math remain on the critical chain; all slice
  #        starts are Python ints that are multiples of 8, so every gx load
  #        and hseq store is a full, unmasked sublane tile.
  # TODO(synk): if the bundle dump shows Mosaic re-pushing W_hh into the MXU
  # every step, switch to pltpu.matmul_push_rhs / matmul_acc_lhs / matmul_pop
  # to keep W_hh resident in the MXU staging registers across the recurrence.
  # TODO(synk): if T ever grows beyond a few tens, replace the full Python
  # unroll with lax.fori_loop(..., unroll=4..8) to cap vreg pressure.
  whh = whh_ref[...]
  h = h0_ref[...]
  c = c0_ref[...]
  for t in range(T):
    gates = gx_ref[pl.ds(t * BC, BC), :] + jnp.dot(
        h, whh, preferred_element_type=jnp.float32)          # (BC, 4H)
    # 3 EUP pushes per step instead of 5: sigmoid / tanh once over the full
    # (BC, 4H) vreg; i/f/o from the sigmoid result, g from the tanh result.
    # The 32-lane extractions fall on the XLU slot, which has slack here.
    sg = jax.nn.sigmoid(gates)
    tg = jnp.tanh(gates)
    i_g = sg[:, 0 * H:1 * H]
    f_g = sg[:, 1 * H:2 * H]
    g_g = tg[:, 2 * H:3 * H]
    o_g = sg[:, 3 * H:4 * H]
    c = f_g * c + i_g * g_g
    h = o_g * jnp.tanh(c)
    hseq_ref[pl.ds(t * BC, BC), :] = h

  hn_ref[...] = h
  cn_ref[...] = c

  # --- 3. Hoisted FC + tanh: ONE matmul + ONE store for the whole sequence.
  #        (A=4 < 128 means this store is lane-masked; if action_dim or head
  #        count grows, pad/stack the head outputs along lanes.)
  out_ref[...] = jnp.tanh(
      jnp.dot(hseq_ref[...], wfc_ref[...], preferred_element_type=jnp.float32)
      + bfc_ref[...]).astype(out_ref.dtype)


def prepare_params(params):
  """One-time parameter preprocessing, hoisted out of the per-call hot path.

  params: PyTorch-shaped LSTM/Linear parameters
    w_ih (4H, D), w_hh (4H, H), b_ih (4H,), b_hh (4H,), w_fc (A, H), b_fc (A,)
  """
  return {
      "wih_t": jnp.transpose(params["w_ih"]).astype(jnp.float32),        # (D, 4H)
      "whh_t": jnp.transpose(params["w_hh"]).astype(jnp.float32),        # (H, 4H)
      "b": (params["b_ih"] + params["b_hh"]).astype(jnp.float32)[None],  # (1, 4H)
      "wfc_t": jnp.transpose(params["w_fc"]).astype(jnp.float32),        # (H, A)
      "bfc": params["b_fc"].astype(jnp.float32)[None],                   # (1, A)
  }


@functools.partial(jax.jit, static_argnames=("batch_chunk",))
def recurrent_policy_forward(state_seq, hidden, prepared, *, batch_chunk=8):
  """Mirrors RecurrentPolicyNetwork.forward (batch_first, like PyTorch).

  state_seq: (B, T, state_dim) float32
  hidden   : (h0, c0), each (1, B, hidden_dim)
  prepared : output of prepare_params(params)
  returns  : (action_seq (B, T, A), (hn, cn) each (1, B, H))
  """
  h0, c0 = hidden
  B, T, D = state_seq.shape
  H = h0.shape[-1]
  A = prepared["wfc_t"].shape[1]

  BC = batch_chunk                       # must be a multiple of 8 (f32 sublane tile)
  B_pad = ((B + BC - 1) // BC) * BC
  NC = B_pad // BC
  pad_b = B_pad - B

  x = state_seq.astype(jnp.float32)
  h0_2d = h0.reshape(B, H).astype(jnp.float32)
  c0_2d = c0.reshape(B, H).astype(jnp.float32)
  if pad_b:
    # Padded batch rows run an independent LSTM on zeros and are sliced off.
    x = jnp.pad(x, ((0, pad_b), (0, 0), (0, 0)))
    h0_2d = jnp.pad(h0_2d, ((0, pad_b), (0, 0)))
    c0_2d = jnp.pad(c0_2d, ((0, pad_b), (0, 0)))

  # Chunked, time-major activations: (NC, T*BC, ·); row index = t*BC + b_local.
  x_ch = (x.transpose(1, 0, 2)            # (T, B_pad, D)
            .reshape(T, NC, BC, D)
            .transpose(1, 0, 2, 3)         # (NC, T, BC, D)
            .reshape(NC, T * BC, D))
  h0_ch = h0_2d.reshape(NC, BC, H)
  c0_ch = c0_2d.reshape(NC, BC, H)

  # NOTE: everything for one chunk is VMEM-resident (< 100 KiB here).  For
  # long T / large B: on v5e/v6e the scoped default is 32/128 MiB, on v7x the
  # physical VMEM is only 64 MiB (32 MiB scoped), so the all-in-VMEM breakpoint
  # arrives 2x sooner — switch to a streamed grid over T with gx/out tiles of
  # >= ~512 rows and set vmem_limit_bytes explicitly.
  grid_spec = pltpu.PrefetchScalarGridSpec(
      num_scalar_prefetch=0,
      grid=(NC,),
      in_specs=[
          pl.BlockSpec((None, T * BC, D), lambda c: (c, 0, 0)),
          pl.BlockSpec((None, BC, H), lambda c: (c, 0, 0)),
          pl.BlockSpec((None, BC, H), lambda c: (c, 0, 0)),
          pl.BlockSpec((D, 4 * H), lambda c: (0, 0)),
          pl.BlockSpec((H, 4 * H), lambda c: (0, 0)),
          pl.BlockSpec((1, 4 * H), lambda c: (0, 0)),
          pl.BlockSpec((H, A), lambda c: (0, 0)),
          pl.BlockSpec((1, A), lambda c: (0, 0)),
      ],
      out_specs=(
          pl.BlockSpec((None, T * BC, A), lambda c: (c, 0, 0)),
          pl.BlockSpec((None, BC, H), lambda c: (c, 0, 0)),
          pl.BlockSpec((None, BC, H), lambda c: (c, 0, 0)),
      ),
      scratch_shapes=[
          pltpu.VMEM((T * BC, 4 * H), jnp.float32),   # gx: hoisted input gates
          pltpu.VMEM((T * BC, H), jnp.float32),       # hseq: hidden sequence
      ],
  )

  out_ch, hn_ch, cn_ch = pl.pallas_call(
      _lstm_policy_kernel,
      out_shape=(
          jax.ShapeDtypeStruct((NC, T * BC, A), jnp.float32),
          jax.ShapeDtypeStruct((NC, BC, H), jnp.float32),
          jax.ShapeDtypeStruct((NC, BC, H), jnp.float32),
      ),
      grid_spec=grid_spec,
      # Batch chunks are independent -> "parallel": on v7x this lets the two
      # TensorCores split the chunk axis when B grows; no effect on v5e/v6e.
      compiler_params=pltpu.CompilerParams(
          dimension_semantics=("parallel",)),
  )(x_ch, h0_ch, c0_ch,
    prepared["wih_t"], prepared["whh_t"], prepared["b"],
    prepared["wfc_t"], prepared["bfc"])

  # Back to the PyTorch batch-first layout and strip batch padding.
  action_seq = (out_ch.reshape(NC, T, BC, A)
                      .transpose(1, 0, 2, 3)     # (T, NC, BC, A)
                      .reshape(T, B_pad, A)
                      .transpose(1, 0, 2)[:B])   # (B, T, A)
  hn = hn_ch.reshape(B_pad, H)[:B][None]         # (1, B, H)
  cn = cn_ch.reshape(B_pad, H)[:B][None]
  return action_seq, (hn, cn)


def _reference_forward(state_seq, hidden, params):
  """Pure-JAX reference (PyTorch LSTM semantics) for correctness checking."""
  h0, c0 = hidden
  B, T, D = state_seq.shape
  H = h0.shape[-1]
  wih_t = params["w_ih"].T
  whh_t = params["w_hh"].T
  b = params["b_ih"] + params["b_hh"]

  def step(carry, x_t):
    h, c = carry
    gates = x_t @ wih_t + h @ whh_t + b
    i_g = jax.nn.sigmoid(gates[:, 0 * H:1 * H])
    f_g = jax.nn.sigmoid(gates[:, 1 * H:2 * H])
    g_g = jnp.tanh(gates[:, 2 * H:3 * H])
    o_g = jax.nn.sigmoid(gates[:, 3 * H:4 * H])
    c_new = f_g * c + i_g * g_g
    h_new = o_g * jnp.tanh(c_new)
    return (h_new, c_new), h_new

  (hn, cn), hs = lax.scan(step, (h0[0], c0[0]),
                          jnp.transpose(state_seq, (1, 0, 2)))
  out = jnp.transpose(hs, (1, 0, 2))
  action = jnp.tanh(out @ params["w_fc"].T + params["b_fc"])
  return action, (hn[None], cn[None])


if __name__ == "__main__":
  # Small shapes consistent with the module's forward.
  B, T, STATE_DIM, HIDDEN_DIM, ACTION_DIM = 2, 8, 16, 32, 4

  key = jax.random.PRNGKey(0)
  ks = jax.random.split(key, 8)
  scale = 1.0 / jnp.sqrt(HIDDEN_DIM)
  params = {
      "w_ih": jax.random.uniform(ks[0], (4 * HIDDEN_DIM, STATE_DIM), jnp.float32, -scale, scale),
      "w_hh": jax.random.uniform(ks[1], (4 * HIDDEN_DIM, HIDDEN_DIM), jnp.float32, -scale, scale),
      "b_ih": jax.random.uniform(ks[2], (4 * HIDDEN_DIM,), jnp.float32, -scale, scale),
      "b_hh": jax.random.uniform(ks[3], (4 * HIDDEN_DIM,), jnp.float32, -scale, scale),
      "w_fc": jax.random.uniform(ks[4], (ACTION_DIM, HIDDEN_DIM), jnp.float32, -scale, scale),
      "b_fc": jax.random.uniform(ks[5], (ACTION_DIM,), jnp.float32, -scale, scale),
  }

  state_seq = jax.random.normal(ks[6], (B, T, STATE_DIM), jnp.float32)
  # init_hidden(batch_size) would give zeros; use a random hidden here to
  # exercise the h0/c0 paths (forward accepts any hidden).
  h0 = 0.1 * jax.random.normal(ks[7], (1, B, HIDDEN_DIM), jnp.float32)
  c0 = 0.1 * jax.random.normal(jax.random.fold_in(ks[7], 1), (1, B, HIDDEN_DIM), jnp.float32)

  # One-time parameter preprocessing (hoisted out of the per-call hot path).
  prepared = prepare_params(params)

  action_seq, (hn, cn) = recurrent_policy_forward(state_seq, (h0, c0), prepared)
  action_seq = jax.block_until_ready(action_seq)
  hn = jax.block_until_ready(hn)
  cn = jax.block_until_ready(cn)

  # Correctness check against pure-JAX reference.
  ref_action, (ref_hn, ref_cn) = _reference_forward(state_seq, (h0, c0), params)
  assert action_seq.shape == (B, T, ACTION_DIM)
  assert hn.shape == (1, B, HIDDEN_DIM) and cn.shape == (1, B, HIDDEN_DIM)
  assert jnp.allclose(action_seq, ref_action, atol=1e-5, rtol=1e-5)
  assert jnp.allclose(hn, ref_hn, atol=1e-5, rtol=1e-5)
  assert jnp.allclose(cn, ref_cn, atol=1e-5, rtol=1e-5)

  print("KERNEL_OK")
</pallas_src>

<mosaic_0001>
module attributes {stable_mosaic.version = 11 : i64} {
  func.func @_lstm_policy_kernel(%arg0: i32, %arg1: memref<1x64x16xf32, #tpu.memory_space<vmem>>, %arg2: memref<1x8x32xf32, #tpu.memory_space<vmem>>, %arg3: memref<1x8x32xf32, #tpu.memory_space<vmem>>, %arg4: memref<16x128xf32, #tpu.memory_space<vmem>>, %arg5: memref<32x128xf32, #tpu.memory_space<vmem>>, %arg6: memref<1x128xf32, #tpu.memory_space<vmem>>, %arg7: memref<32x4xf32, #tpu.memory_space<vmem>>, %arg8: memref<1x4xf32, #tpu.memory_space<vmem>>, %arg9: memref<1x64x4xf32, #tpu.memory_space<vmem>>, %arg10: memref<1x8x32xf32, #tpu.memory_space<vmem>>, %arg11: memref<1x8x32xf32, #tpu.memory_space<vmem>>, %arg12: memref<64x128xf32, #tpu.memory_space<vmem>>, %arg13: memref<64x32xf32, #tpu.memory_space<vmem>>) attributes {dimension_semantics = [#tpu.dimension_semantics<parallel>], iteration_bounds = array<i64: 1>, scalar_prefetch = 0 : i64, scratch_operands = 2 : i64, tpu.core_type = #tpu.core_type<tc>, window_params = [{transform_indices = @transform_0, window_bounds = array<i64: 1, 64, 16>}, {transform_indices = @transform_1, window_bounds = array<i64: 1, 8, 32>}, {transform_indices = @transform_2, window_bounds = array<i64: 1, 8, 32>}, {pipeline_mode = #tpu.pipeline_mode<synchronous>, transform_indices = @transform_3, window_bounds = array<i64: 16, 128>}, {pipeline_mode = #tpu.pipeline_mode<synchronous>, transform_indices = @transform_4, window_bounds = array<i64: 32, 128>}, {pipeline_mode = #tpu.pipeline_mode<synchronous>, transform_indices = @transform_5, window_bounds = array<i64: 1, 128>}, {pipeline_mode = #tpu.pipeline_mode<synchronous>, transform_indices = @transform_6, window_bounds = array<i64: 32, 4>}, {pipeline_mode = #tpu.pipeline_mode<synchronous>, transform_indices = @transform_7, window_bounds = array<i64: 1, 4>}, {transform_indices = @transform_8, window_bounds = array<i64: 1, 64, 4>}, {transform_indices = @transform_9, window_bounds = array<i64: 1, 8, 32>}, {transform_indices = @transform_10, window_bounds = array<i64: 1, 8, 32>}]} {
    %c0 = arith.constant 0 : index
    %c0_0 = arith.constant 0 : index
    %c0_1 = arith.constant 0 : index
    %0 = vector.load %arg1[%c0, %c0_0, %c0_1] : memref<1x64x16xf32, #tpu.memory_space<vmem>>, vector<1x64x16xf32>
    %1 = vector.shape_cast %0 : vector<1x64x16xf32> to vector<64x16xf32>
    %c0_2 = arith.constant 0 : index
    %c0_3 = arith.constant 0 : index
    %2 = vector.load %arg4[%c0_2, %c0_3] : memref<16x128xf32, #tpu.memory_space<vmem>>, vector<16x128xf32>
    %cst = arith.constant dense<0.000000e+00> : vector<64x128xf32>
    %3 = tpu.matmul %1, %2, %cst {dimension_numbers = #tpu.dot_dimension_numbers<[1], [0], [0], [1], [0, 0, 1, 1], [], []>} : vector<64x16xf32>, vector<16x128xf32>, vector<64x128xf32> -> vector<64x128xf32>
    %c0_4 = arith.constant 0 : index
    %c0_5 = arith.constant 0 : index
    %4 = vector.load %arg6[%c0_4, %c0_5] : memref<1x128xf32, #tpu.memory_space<vmem>>, vector<1x128xf32>
    %5 = vector.broadcast %4 : vector<1x128xf32> to vector<64x128xf32>
    %6 = arith.addf %3, %5 : vector<64x128xf32>
    %c0_6 = arith.constant 0 : index
    %c0_7 = arith.constant 0 : index
    %7 = vector.load %arg12[%c0_6, %c0_7] : memref<64x128xf32, #tpu.memory_space<vmem>>, vector<64x128xf32>
    tpu.vector_store %arg12[%c0_6, %c0_7], %6 {strides = array<i32>} : memref<64x128xf32, #tpu.memory_space<vmem>>, vector<64x128xf32>,
    %c0_8 = arith.constant 0 : index
    %c0_9 = arith.constant 0 : index
    %8 = vector.load %arg5[%c0_8, %c0_9] : memref<32x128xf32, #tpu.memory_space<vmem>>, vector<32x128xf32>
    %c0_10 = arith.constant 0 : index
    %c0_11 = arith.constant 0 : index
    %c0_12 = arith.constant 0 : index
    %9 = vector.load %arg2[%c0_10, %c0_11, %c0_12] : memref<1x8x32xf32, #tpu.memory_space<vmem>>, vector<1x8x32xf32>
    %10 = vector.shape_cast %9 : vector<1x8x32xf32> to vector<8x32xf32>
    %c0_13 = arith.constant 0 : index
    %c0_14 = arith.constant 0 : index
    %c0_15 = arith.constant 0 : index
    %11 = vector.load %arg3[%c0_13, %c0_14, %c0_15] : memref<1x8x32xf32, #tpu.memory_space<vmem>>, vector<1x8x32xf32>
    %12 = vector.shape_cast %11 : vector<1x8x32xf32> to vector<8x32xf32>
    %c0_16 = arith.constant 0 : index
    %c0_17 = arith.constant 0 : index
    %13 = vector.load %arg12[%c0_16, %c0_17] : memref<64x128xf32, #tpu.memory_space<vmem>>, vector<8x128xf32>
    %cst_18 = arith.constant dense<0.000000e+00> : vector<8x128xf32>
    %14 = tpu.matmul %10, %8, %cst_18 {dimension_numbers = #tpu.dot_dimension_numbers<[1], [0], [0], [1], [0, 0, 1, 1], [], []>} : vector<8x32xf32>, vector<32x128xf32>, vector<8x128xf32> -> vector<8x128xf32>
    %15 = arith.addf %13, %14 : vector<8x128xf32>
    %16 = arith.negf %15 : vector<8x128xf32>
    %17 = math.exp %16 : vector<8x128xf32>
    %cst_19 = arith.constant 1.000000e+00 : f32
    %18 = vector.broadcast %cst_19 : f32 to vector<8x128xf32>
    %19 = arith.addf %18, %17 : vector<8x128xf32>
    %20 = arith.divf %18, %19 : vector<8x128xf32>
    %21 = math.tanh %15 : vector<8x128xf32>
    %22 = vector.extract_strided_slice %20 {offsets = [0, 0], sizes = [8, 32], strides = [1, 1]} : vector<8x128xf32> to vector<8x32xf32>
    %23 = vector.extract_strided_slice %20 {offsets = [0, 32], sizes = [8, 32], strides = [1, 1]} : vector<8x128xf32> to vector<8x32xf32>
    %24 = vector.extract_strided_slice %21 {offsets = [0, 64], sizes = [8, 32], strides = [1, 1]} : vector<8x128xf32> to vector<8x32xf32>
    %25 = vector.extract_strided_slice %20 {offsets = [0, 96], sizes = [8, 32], strides = [1, 1]} : vector<8x128xf32> to vector<8x32xf32>
    %26 = arith.mulf %23, %12 : vector<8x32xf32>
    %27 = arith.mulf %22, %24 : vector<8x32xf32>
    %28 = arith.addf %26, %27 : vector<8x32xf32>
    %29 = math.tanh %28 : vector<8x32xf32>
    %30 = arith.mulf %25, %29 : vector<8x32xf32>
    %c0_20 = arith.constant 0 : index
    %c0_21 = arith.constant 0 : index
    %31 = vector.load %arg13[%c0_20, %c0_21] : memref<64x32xf32, #tpu.memory_space<vmem>>, vector<8x32xf32>
    tpu.vector_store %arg13[%c0_20, %c0_21], %30 {strides = array<i32>} : memref<64x32xf32, #tpu.memory_space<vmem>>, vector<8x32xf32>,
    %c8 = arith.constant 8 : index
    %c0_22 = arith.constant 0 : index
    %32 = vector.load %arg12[%c8, %c0_22] : memref<64x128xf32, #tpu.memory_space<vmem>>, vector<8x128xf32>
    %cst_23 = arith.constant dense<0.000000e+00> : vector<8x128xf32>
    %33 = tpu.matmul %30, %8, %cst_23 {dimension_numbers = #tpu.dot_dimension_numbers<[1], [0], [0], [1], [0, 0, 1, 1], [], []>} : vector<8x32xf32>, vector<32x128xf32>, vector<8x128xf32> -> vector<8x128xf32>
    %34 = arith.addf %32, %33 : vector<8x128xf32>
    %35 = arith.negf %34 : vector<8x128xf32>
    %36 = math.exp %35 : vector<8x128xf32>
    %cst_24 = arith.constant 1.000000e+00 : f32
    %37 = vector.broadcast %cst_24 : f32 to vector<8x128xf32>
    %38 = arith.addf %37, %36 : vector<8x128xf32>
    %39 = arith.divf %37, %38 : vector<8x128xf32>
    %40 = math.tanh %34 : vector<8x128xf32>
    %41 = vector.extract_strided_slice %39 {offsets = [0, 0], sizes = [8, 32], strides = [1, 1]} : vector<8x128xf32> to vector<8x32xf32>
    %42 = vector.extract_strided_slice %39 {offsets = [0, 32], sizes = [8, 32], strides = [1, 1]} : vector<8x128xf32> to vector<8x32xf32>
    %43 = vector.extract_strided_slice %40 {offsets = [0, 64], sizes = [8, 32], strides = [1, 1]} : vector<8x128xf32> to vector<8x32xf32>
    %44 = vector.extract_strided_slice %39 {offsets = [0, 96], sizes = [8, 32], strides = [1, 1]} : vector<8x128xf32> to vector<8x32xf32>
    %45 = arith.mulf %42, %28 : vector<8x32xf32>
    %46 = arith.mulf %41, %43 : vector<8x32xf32>
    %47 = arith.addf %45, %46 : vector<8x32xf32>
    %48 = math.tanh %47 : vector<8x32xf32>
    %49 = arith.mulf %44, %48 : vector<8x32xf32>
    %c8_25 = arith.constant 8 : index
    %c0_26 = arith.constant 0 : index
    %50 = vector.load %arg13[%c8_25, %c0_26] : memref<64x32xf32, #tpu.memory_space<vmem>>, vector<8x32xf32>
    tpu.vector_store %arg13[%c8_25, %c0_26], %49 {strides = array<i32>} : memref<64x32xf32, #tpu.memory_space<vmem>>, vector<8x32xf32>,
    %c16 = arith.constant 16 : index
    %c0_27 = arith.constant 0 : index
    %51 = vector.load %arg12[%c16, %c0_27] : memref<64x128xf32, #tpu.memory_space<vmem>>, vector<8x128xf32>
    %cst_28 = arith.constant dense<0.000000e+00> : vector<8x128xf32>
    %52 = tpu.matmul %49, %8, %cst_28 {dimension_numbers = #tpu.dot_dimension_numbers<[1], [0], [0], [1], [0, 0, 1, 1], [], []>} : vector<8x32xf32>, vector<32x128xf32>, vector<8x128xf32> -> vector<8x128xf32>
    %53 = arith.addf %51, %52 : vector<8x128xf32>
    %54 = arith.negf %53 : vector<8x128xf32>
    %55 = math.exp %54 : vector<8x128xf32>
    %cst_29 = arith.constant 1.000000e+00 : f32
    %56 = vector.broadcast %cst_29 : f32 to vector<8x128xf32>
    %57 = arith.addf %56, %55 : vector<8x128xf32>
    %58 = arith.divf %56, %57 : vector<8x128xf32>
    %59 = math.tanh %53 : vector<8x128xf32>
    %60 = vector.extract_strided_slice %58 {offsets = [0, 0], sizes = [8, 32], strides = [1, 1]} : vector<8x128xf32> to vector<8x32xf32>
    %61 = vector.extract_strided_slice %58 {offsets = [0, 32], sizes = [8, 32], strides = [1, 1]} : vector<8x128xf32> to vector<8x32xf32>
    %62 = vector.extract_strided_slice %59 {offsets = [0, 64], sizes = [8, 32], strides = [1, 1]} : vector<8x128xf32> to vector<8x32xf32>
    %63 = vector.extract_strided_slice %58 {offsets = [0, 96], sizes = [8, 32], strides = [1, 1]} : vector<8x128xf32> to vector<8x32xf32>
    %64 = arith.mulf %61, %47 : vector<8x32xf32>
    %65 = arith.mulf %60, %62 : vector<8x32xf32>
    %66 = arith.addf %64, %65 : vector<8x32xf32>
    %67 = math.tanh %66 : vector<8x32xf32>
    %68 = arith.mulf %63, %67 : vector<8x32xf32>
    %c16_30 = arith.constant 16 : index
    %c0_31 = arith.constant 0 : index
    %69 = vector.load %arg13[%c16_30, %c0_31] : memref<64x32xf32, #tpu.memory_space<vmem>>, vector<8x32xf32>
    tpu.vector_store %arg13[%c16_30, %c0_31], %68 {strides = array<i32>} : memref<64x32xf32, #tpu.memory_space<vmem>>, vector<8x32xf32>,
    %c24 = arith.constant 24 : index
    %c0_32 = arith.constant 0 : index
    %70 = vector.load %arg12[%c24, %c0_32] : memref<64x128xf32, #tpu.memory_space<vmem>>, vector<8x128xf32>
    %cst_33 = arith.constant dense<0.000000e+00> : vector<8x128xf32>
    %71 = tpu.matmul %68, %8, %cst_33 {dimension_numbers = #tpu.dot_dimension_numbers<[1], [0], [0], [1], [0, 0, 1, 1], [], []>} : vector<8x32xf32>, vector<32x128xf32>, vector<8x128xf32> -> vector<8x128xf32>
    %72 = arith.addf %70, %71 : vector<8x128xf32>
    %73 = arith.negf %72 : vector<8x128xf32>
    %74 = math.exp %73 : vector<8x128xf32>
    %cst_34 = arith.constant 1.000000e+00 : f32
    %75 = vector.broadcast %cst_34 : f32 to vector<8x128xf32>
    %76 = arith.addf %75, %74 : vector<8x128xf32>
    %77 = arith.divf %75, %76 : vector<8x128xf32>
    %78 = math.tanh %72 : vector<8x128xf32>
    %79 = vector.extract_strided_slice %77 {offsets = [0, 0], sizes = [8, 32], strides = [1, 1]} : vector<8x128xf32> to vector<8x32xf32>
    %80 = vector.extract_strided_slice %77 {offsets = [0, 32], sizes = [8, 32], strides = [1, 1]} : vector<8x128xf32> to vector<8x32xf32>
    %81 = vector.extract_strided_slice %78 {offsets = [0, 64], sizes = [8, 32], strides = [1, 1]} : vector<8x128xf32> to vector<8x32xf32>
    %82 = vector.extract_strided_slice %77 {offsets = [0, 96], sizes = [8, 32], strides = [1, 1]} : vector<8x128xf32> to vector<8x32xf32>
    %83 = arith.mulf %80, %66 : vector<8x32xf32>
    %84 = arith.mulf %79, %81 : vector<8x32xf32>
    %85 = arith.addf %83, %84 : vector<8x32xf32>
    %86 = math.tanh %85 : vector<8x32xf32>
    %87 = arith.mulf %82, %86 : vector<8x32xf32>
    %c24_35 = arith.constant 24 : index
    %c0_36 = arith.constant 0 : index
    %88 = vector.load %arg13[%c24_35, %c0_36] : memref<64x32xf32, #tpu.memory_space<vmem>>, vector<8x32xf32>
    tpu.vector_store %arg13[%c24_35, %c0_36], %87 {strides = array<i32>} : memref<64x32xf32, #tpu.memory_space<vmem>>, vector<8x32xf32>,
    %c32 = arith.constant 32 : index
    %c0_37 = arith.constant 0 : index
    %89 = vector.load %arg12[%c32, %c0_37] : memref<64x128xf32, #tpu.memory_space<vmem>>, vector<8x128xf32>
    %cst_38 = arith.constant dense<0.000000e+00> : vector<8x128xf32>
    %90 = tpu.matmul %87, %8, %cst_38 {dimension_numbers = #tpu.dot_dimension_numbers<[1], [0], [0], [1], [0, 0, 1, 1], [], []>} : vector<8x32xf32>, vector<32x128xf32>, vector<8x128xf32> -> vector<8x128xf32>
    %91 = arith.addf %89, %90 : vector<8x128xf32>
    %92 = arith.negf %91 : vector<8x128xf32>
    %93 = math.exp %92 : vector<8x128xf32>
    %cst_39 = arith.constant 1.000000e+00 : f32
    %94 = vector.broadcast %cst_39 : f32 to vector<8x128xf32>
    %95 = arith.addf %94, %93 : vector<8x128xf32>
    %96 = arith.divf %94, %95 : vector<8x128xf32>
    %97 = math.tanh %91 : vector<8x128xf32>
    %98 = vector.extract_strided_slice %96 {offsets = [0, 0], sizes = [8, 32], strides = [1, 1]} : vector<8x128xf32> to vector<8x32xf32>
    %99 = vector.extract_strided_slice %96 {offsets = [0, 32], sizes = [8, 32], strides = [1, 1]} : vector<8x128xf32> to vector<8x32xf32>
    %100 = vector.extract_strided_slice %97 {offsets = [0, 64], sizes = [8, 32], strides = [1, 1]} : vector<8x128xf32> to vector<8x32xf32>
    %101 = vector.extract_strided_slice %96 {offsets = [0, 96], sizes = [8, 32], strides = [1, 1]} : vector<8x128xf32> to vector<8x32xf32>
    %102 = arith.mulf %99, %85 : vector<8x32xf32>
    %103 = arith.mulf %98, %100 : vector<8x32xf32>
    %104 = arith.addf %102, %103 : vector<8x32xf32>
    %105 = math.tanh %104 : vector<8x32xf32>
    %106 = arith.mulf %101, %105 : vector<8x32xf32>
    %c32_40 = arith.constant 32 : index
    %c0_41 = arith.constant 0 : index
    %107 = vector.load %arg13[%c32_40, %c0_41] : memref<64x32xf32, #tpu.memory_space<vmem>>, vector<8x32xf32>
    tpu.vector_store %arg13[%c32_40, %c0_41], %106 {strides = array<i32>} : memref<64x32xf32, #tpu.memory_space<vmem>>, vector<8x32xf32>,
    %c40 = arith.constant 40 : index
    %c0_42 = arith.constant 0 : index
    %108 = vector.load %arg12[%c40, %c0_42] : memref<64x128xf32, #tpu.memory_space<vmem>>, vector<8x128xf32>
    %cst_43 = arith.constant dense<0.000000e+00> : vector<8x128xf32>
    %109 = tpu.matmul %106, %8, %cst_43 {dimension_numbers = #tpu.dot_dimension_numbers<[1], [0], [0], [1], [0, 0, 1, 1], [], []>} : vector<8x32xf32>, vector<32x128xf32>, vector<8x128xf32> -> vector<8x128xf32>
    %110 = arith.addf %108, %109 : vector<8x128xf32>
    %111 = arith.negf %110 : vector<8x128xf32>
    %112 = math.exp %111 : vector<8x128xf32>
    %cst_44 = arith.constant 1.000000e+00 : f32
    %113 = vector.broadcast %cst_44 : f32 to vector<8x128xf32>
    %114 = arith.addf %113, %112 : vector<8x128xf32>
    %115 = arith.divf %113, %114 : vector<8x128xf32>
    %116 = math.tanh %110 : vector<8x128xf32>
    %117 = vector.extract_strided_slice %115 {offsets = [0, 0], sizes = [8, 32], strides = [1, 1]} : vector<8x128xf32> to vector<8x32xf32>
    %118 = vector.extract_strided_slice %115 {offsets = [0, 32], sizes = [8, 32], strides = [1, 1]} : vector<8x128xf32> to vector<8x32xf32>
    %119 = vector.extract_strided_slice %116 {offsets = [0, 64], sizes = [8, 32], strides = [1, 1]} : vector<8x128xf32> to vector<8x32xf32>
    %120 = vector.extract_strided_slice %115 {offsets = [0, 96], sizes = [8, 32], strides = [1, 1]} : vector<8x128xf32> to vector<8x32xf32>
    %121 = arith.mulf %118, %104 : vector<8x32xf32>
    %122 = arith.mulf %117, %119 : vector<8x32xf32>
    %123 = arith.addf %121, %122 : vector<8x32xf32>
    %124 = math.tanh %123 : vector<8x32xf32>
    %125 = arith.mulf %120, %124 : vector<8x32xf32>
    %c40_45 = arith.constant 40 : index
    %c0_46 = arith.constant 0 : index
    %126 = vector.load %arg13[%c40_45, %c0_46] : memref<64x32xf32, #tpu.memory_space<vmem>>, vector<8x32xf32>
    tpu.vector_store %arg13[%c40_45, %c0_46], %125 {strides = array<i32>} : memref<64x32xf32, #tpu.memory_space<vmem>>, vector<8x32xf32>,
    %c48 = arith.constant 48 : index
    %c0_47 = arith.constant 0 : index
    %127 = vector.load %arg12[%c48, %c0_47] : memref<64x128xf32, #tpu.memory_space<vmem>>, vector<8x128xf32>
    %cst_48 = arith.constant dense<0.000000e+00> : vector<8x128xf32>
    %128 = tpu.matmul %125, %8, %cst_48 {dimension_numbers = #tpu.dot_dimension_numbers<[1], [0], [0], [1], [0, 0, 1, 1], [], []>} : vector<8x32xf32>, vector<32x128xf32>, vector<8x128xf32> -> vector<8x128xf32>
    %129 = arith.addf %127, %128 : vector<8x128xf32>
    %130 = arith.negf %129 : vector<8x128xf32>
    %131 = math.exp %130 : vector<8x128xf32>
    %cst_49 = arith.constant 1.000000e+00 : f32
    %132 = vector.broadcast %cst_49 : f32 to vector<8x128xf32>
    %133 = arith.addf %132, %131 : vector<8x128xf32>
    %134 = arith.divf %132, %133 : vector<8x128xf32>
    %135 = math.tanh %129 : vector<8x128xf32>
    %136 = vector.extract_strided_slice %134 {offsets = [0, 0], sizes = [8, 32], strides = [1, 1]} : vector<8x128xf32> to vector<8x32xf32>
    %137 = vector.extract_strided_slice %134 {offsets = [0, 32], sizes = [8, 32], strides = [1, 1]} : vector<8x128xf32> to vector<8x32xf32>
    %138 = vector.extract_strided_slice %135 {offsets = [0, 64], sizes = [8, 32], strides = [1, 1]} : vector<8x128xf32> to vector<8x32xf32>
    %139 = vector.extract_strided_slice %134 {offsets = [0, 96], sizes = [8, 32], strides = [1, 1]} : vector<8x128xf32> to vector<8x32xf32>
    %140 = arith.mulf %137, %123 : vector<8x32xf32>
    %141 = arith.mulf %136, %138 : vector<8x32xf32>
    %142 = arith.addf %140, %141 : vector<8x32xf32>
    %143 = math.tanh %142 : vector<8x32xf32>
    %144 = arith.mulf %139, %143 : vector<8x32xf32>
    %c48_50 = arith.constant 48 : index
    %c0_51 = arith.constant 0 : index
    %145 = vector.load %arg13[%c48_50, %c0_51] : memref<64x32xf32, #tpu.memory_space<vmem>>, vector<8x32xf32>
    tpu.vector_store %arg13[%c48_50, %c0_51], %144 {strides = array<i32>} : memref<64x32xf32, #tpu.memory_space<vmem>>, vector<8x32xf32>,
    %c56 = arith.constant 56 : index
    %c0_52 = arith.constant 0 : index
    %146 = vector.load %arg12[%c56, %c0_52] : memref<64x128xf32, #tpu.memory_space<vmem>>, vector<8x128xf32>
    %cst_53 = arith.constant dense<0.000000e+00> : vector<8x128xf32>
    %147 = tpu.matmul %144, %8, %cst_53 {dimension_numbers = #tpu.dot_dimension_numbers<[1], [0], [0], [1], [0, 0, 1, 1], [], []>} : vector<8x32xf32>, vector<32x128xf32>, vector<8x128xf32> -> vector<8x128xf32>
    %148 = arith.addf %146, %147 : vector<8x128xf32>
    %149 = arith.negf %148 : vector<8x128xf32>
    %150 = math.exp %149 : vector<8x128xf32>
    %cst_54 = arith.constant 1.000000e+00 : f32
    %151 = vector.broadcast %cst_54 : f32 to vector<8x128xf32>
    %152 = arith.addf %151, %150 : vector<8x128xf32>
    %153 = arith.divf %151, %152 : vector<8x128xf32>
    %154 = math.tanh %148 : vector<8x128xf32>
    %155 = vector.extract_strided_slice %153 {offsets = [0, 0], sizes = [8, 32], strides = [1, 1]} : vector<8x128xf32> to vector<8x32xf32>
    %156 = vector.extract_strided_slice %153 {offsets = [0, 32], sizes = [8, 32], strides = [1, 1]} : vector<8x128xf32> to vector<8x32xf32>
    %157 = vector.extract_strided_slice %154 {offsets = [0, 64], sizes = [8, 32], strides = [1, 1]} : vector<8x128xf32> to vector<8x32xf32>
    %158 = vector.extract_strided_slice %153 {offsets = [0, 96], sizes = [8, 32], strides = [1, 1]} : vector<8x128xf32> to vector<8x32xf32>
    %159 = arith.mulf %156, %142 : vector<8x32xf32>
    %160 = arith.mulf %155, %157 : vector<8x32xf32>
    %161 = arith.addf %159, %160 : vector<8x32xf32>
    %162 = math.tanh %161 : vector<8x32xf32>
    %163 = arith.mulf %158, %162 : vector<8x32xf32>
    %c56_55 = arith.constant 56 : index
    %c0_56 = arith.constant 0 : index
    %164 = vector.load %arg13[%c56_55, %c0_56] : memref<64x32xf32, #tpu.memory_space<vmem>>, vector<8x32xf32>
    tpu.vector_store %arg13[%c56_55, %c0_56], %163 {strides = array<i32>} : memref<64x32xf32, #tpu.memory_space<vmem>>, vector<8x32xf32>,
    %c0_57 = arith.constant 0 : index
    %c0_58 = arith.constant 0 : index
    %c0_59 = arith.constant 0 : index
    %165 = vector.load %arg10[%c0_57, %c0_58, %c0_59] : memref<1x8x32xf32, #tpu.memory_space<vmem>>, vector<1x8x32xf32>
    %166 = vector.shape_cast %165 : vector<1x8x32xf32> to vector<8x32xf32>
    %167 = vector.shape_cast %163 : vector<8x32xf32> to vector<1x8x32xf32>
    tpu.vector_store %arg10[%c0_57, %c0_58, %c0_59], %167 {strides = array<i32>} : memref<1x8x32xf32, #tpu.memory_space<vmem>>, vector<1x8x32xf32>,
    %c0_60 = arith.constant 0 : index
    %c0_61 = arith.constant 0 : index
    %c0_62 = arith.constant 0 : index
    %168 = vector.load %arg11[%c0_60, %c0_61, %c0_62] : memref<1x8x32xf32, #tpu.memory_space<vmem>>, vector<1x8x32xf32>
    %169 = vector.shape_cast %168 : vector<1x8x32xf32> to vector<8x32xf32>
    %170 = vector.shape_cast %161 : vector<8x32xf32> to vector<1x8x32xf32>
    tpu.vector_store %arg11[%c0_60, %c0_61, %c0_62], %170 {strides = array<i32>} : memref<1x8x32xf32, #tpu.memory_space<vmem>>, vector<1x8x32xf32>,
    %c0_63 = arith.constant 0 : index
    %c0_64 = arith.constant 0 : index
    %171 = vector.load %arg13[%c0_63, %c0_64] : memref<64x32xf32, #tpu.memory_space<vmem>>, vector<64x32xf32>
    %c0_65 = arith.constant 0 : index
    %c0_66 = arith.constant 0 : index
    %172 = vector.load %arg7[%c0_65, %c0_66] : memref<32x4xf32, #tpu.memory_space<vmem>>, vector<32x4xf32>
    %cst_67 = arith.constant dense<0.000000e+00> : vector<64x4xf32>
    %173 = tpu.matmul %171, %172, %cst_67 {dimension_numbers = #tpu.dot_dimension_numbers<[1], [0], [0], [1], [0, 0, 1, 1], [], []>} : vector<64x32xf32>, vector<32x4xf32>, vector<64x4xf32> -> vector<64x4xf32>
    %c0_68 = arith.constant 0 : index
    %c0_69 = arith.constant 0 : index
    %174 = vector.load %arg8[%c0_68, %c0_69] : memref<1x4xf32, #tpu.memory_space<vmem>>, vector<1x4xf32>
    %175 = vector.broadcast %174 : vector<1x4xf32> to vector<64x4xf32>
    %176 = arith.addf %173, %175 : vector<64x4xf32>
    %177 = math.tanh %176 : vector<64x4xf32>
    %c0_70 = arith.constant 0 : index
    %c0_71 = arith.constant 0 : index
    %c0_72 = arith.constant 0 : index
    %178 = vector.load %arg9[%c0_70, %c0_71, %c0_72] : memref<1x64x4xf32, #tpu.memory_space<vmem>>, vector<1x64x4xf32>
    %179 = vector.shape_cast %178 : vector<1x64x4xf32> to vector<64x4xf32>
    %180 = vector.shape_cast %177 : vector<64x4xf32> to vector<1x64x4xf32>
    tpu.vector_store %arg9[%c0_70, %c0_71, %c0_72], %180 {strides = array<i32>} : memref<1x64x4xf32, #tpu.memory_space<vmem>>, vector<1x64x4xf32>,
    return
  }
  func.func @transform_0(%arg0: i32) -> (i32, i32, i32) {
    %c0_i32 = arith.constant 0 : i32
    %c0_i32_0 = arith.constant 0 : i32
    %c0_i32_1 = arith.constant 0 : i32
    return %arg0, %c0_i32, %c0_i32_0 : i32, i32, i32
  }
  func.func @transform_1(%arg0: i32) -> (i32, i32, i32) {
    %c0_i32 = arith.constant 0 : i32
    %c0_i32_0 = arith.constant 0 : i32
    %c0_i32_1 = arith.constant 0 : i32
    return %arg0, %c0_i32, %c0_i32_0 : i32, i32, i32
  }
  func.func @transform_2(%arg0: i32) -> (i32, i32, i32) {
    %c0_i32 = arith.constant 0 : i32
    %c0_i32_0 = arith.constant 0 : i32
    %c0_i32_1 = arith.constant 0 : i32
    return %arg0, %c0_i32, %c0_i32_0 : i32, i32, i32
  }
  func.func @transform_3(%arg0: i32) -> (i32, i32) {
    %c0_i32 = arith.constant 0 : i32
    %c0_i32_0 = arith.constant 0 : i32
    %c0_i32_1 = arith.constant 0 : i32
    return %c0_i32, %c0_i32_0 : i32, i32
  }
  func.func @transform_4(%arg0: i32) -> (i32, i32) {
    %c0_i32 = arith.constant 0 : i32
    %c0_i32_0 = arith.constant 0 : i32
    %c0_i32_1 = arith.constant 0 : i32
    return %c0_i32, %c0_i32_0 : i32, i32
  }
  func.func @transform_5(%arg0: i32) -> (i32, i32) {
    %c0_i32 = arith.constant 0 : i32
    %c0_i32_0 = arith.constant 0 : i32
    %c0_i32_1 = arith.constant 0 : i32
    return %c0_i32, %c0_i32_0 : i32, i32
  }
  func.func @transform_6(%arg0: i32) -> (i32, i32) {
    %c0_i32 = arith.constant 0 : i32
    %c0_i32_0 = arith.constant 0 : i32
    %c0_i32_1 = arith.constant 0 : i32
    return %c0_i32, %c0_i32_0 : i32, i32
  }
  func.func @transform_7(%arg0: i32) -> (i32, i32) {
    %c0_i32 = arith.constant 0 : i32
    %c0_i32_0 = arith.constant 0 : i32
    %c0_i32_1 = arith.constant 0 : i32
    return %c0_i32, %c0_i32_0 : i32, i32
  }
  func.func @transform_8(%arg0: i32) -> (i32, i32, i32) {
    %c0_i32 = arith.constant 0 : i32
    %c0_i32_0 = arith.constant 0 : i32
    %c0_i32_1 = arith.constant 0 : i32
    return %arg0, %c0_i32, %c0_i32_0 : i32, i32, i32
  }
  func.func @transform_9(%arg0: i32) -> (i32, i32, i32) {
    %c0_i32 = arith.constant 0 : i32
    %c0_i32_0 = arith.constant 0 : i32
    %c0_i32_1 = arith.constant 0 : i32
    return %arg0, %c0_i32, %c0_i32_0 : i32, i32, i32
  }
  func.func @transform_10(%arg0: i32) -> (i32, i32, i32) {
    %c0_i32 = arith.constant 0 : i32
    %c0_i32_0 = arith.constant 0 : i32
    %c0_i32_1 = arith.constant 0 : i32
    return %arg0, %c0_i32, %c0_i32_0 : i32, i32, i32
  }
}

</mosaic_0001>

<llo_original>
// kernel: recurrent_policy_forward.1
$region0: #{recurrent_policy_forward.1}
  #allocation0 [shape = 'u32[]', space=smem, size = 0x4, offset = 0x4, fixed_abs, tag = 'smem constant byte address 0x4 - core index']
  #allocation1 [shape = 'u32[144,128]{1,0:T(1,128)}', space=vmem, size = 0x12000, scoped, tag = 'internal scratch']
  #allocation2 [shape = 'f32[64,128]{1,0:T(8,128)}', space=vmem, size = 0x8000, scoped, tag = 'scratch operand']
  #allocation3 [shape = 'f32[64,32]{1,0:T(8,128)}', space=vmem, size = 0x8000, scoped, tag = 'scratch operand']
  %s0 = inlined_call_operand.vmem [shape: f32[1,64,16], index: 0, kind: input, shape index: {}]
  %s1 = inlined_call_operand.vmem [shape: f32[1,8,32], index: 1, kind: input, shape index: {}]
  %s2 = inlined_call_operand.vmem [shape: f32[1,8,32], index: 2, kind: input, shape index: {}]
  %s3 = inlined_call_operand.vmem [shape: f32[16,128], index: 3, kind: input, shape index: {}]
  %s4 = inlined_call_operand.vmem [shape: f32[32,128], index: 4, kind: input, shape index: {}]
  %s5 = inlined_call_operand.vmem [shape: f32[1,128], index: 5, kind: input, shape index: {}]
  %s6 = inlined_call_operand.vmem [shape: f32[32,4], index: 6, kind: input, shape index: {}]
  %s7 = inlined_call_operand.vmem [shape: f32[1,4], index: 7, kind: input, shape index: {}]
  %s8 = inlined_call_operand.vmem [shape: f32[1,64,4], index: 8, kind: output, shape index: {0}]
  %s9 = inlined_call_operand.vmem [shape: f32[1,8,32], index: 9, kind: output, shape index: {1}]
  %s10 = inlined_call_operand.vmem [shape: f32[1,8,32], index: 10, kind: output, shape index: {2}]
  %11 = xla_tuple %s8, %s9, %s10
  %s12 = sld [smem:[#allocation0]]
  $region58: #{recurrent_policy_forward.1} parent=0
    _
  %s14 = ssub.s32 1, %s12
  %s15 = scalar_select 0, %s14, %s12
  // Predicated region
  $region2: #{recurrent_policy_forward.1} parent=0 // pred_check
    _
  $region3: #{recurrent_policy_forward.1} parent=0 // pred_check_branch
    %17 = sbr.rel (0) target = $region5
  $region4: #{recurrent_policy_forward.1} parent=0 // pred_region
    _
  $region5: #{recurrent_policy_forward.1} parent=0 // pred_fallthru
    _
  // Predicated region
  $region6: #{recurrent_policy_forward.1} parent=0 // pred_check
    _
  $region7: #{recurrent_policy_forward.1} parent=0 // pred_check_branch
    %19 = sbr.rel (0) target = $region9
  $region8: #{recurrent_policy_forward.1} parent=0 // pred_region
    _
  $region9: #{recurrent_policy_forward.1} parent=0 // pred_fallthru
    _
  // Predicated region
  $region10: #{recurrent_policy_forward.1} parent=0 // pred_check
    _
  $region11: #{recurrent_policy_forward.1} parent=0 // pred_check_branch
    %21 = sbr.rel (0) target = $region13
  $region12: #{recurrent_policy_forward.1} parent=0 // pred_region
    _
  $region13: #{recurrent_policy_forward.1} parent=0 // pred_fallthru
    _
  // Predicated region
  $region14: #{recurrent_policy_forward.1} parent=0 // pred_check
    _
  $region15: #{recurrent_policy_forward.1} parent=0 // pred_check_branch
    %23 = sbr.rel (0) target = $region17
  $region16: #{recurrent_policy_forward.1} parent=0 // pred_region
    _
  $region17: #{recurrent_policy_forward.1} parent=0 // pred_fallthru
    _
  // Predicated region
  $region18: #{recurrent_policy_forward.1} parent=0 // pred_check
    _
  $region19: #{recurrent_policy_forward.1} parent=0 // pred_check_branch
    %25 = sbr.rel (0) target = $region21
  $region20: #{recurrent_policy_forward.1} parent=0 // pred_region
    _
  $region21: #{recurrent_policy_forward.1} parent=0 // pred_fallthru
    _
  // Predicated region
  $region22: #{recurrent_policy_forward.1} parent=0 // pred_check
    _
  $region23: #{recurrent_policy_forward.1} parent=0 // pred_check_branch
    %27 = sbr.rel (0) target = $region25
  $region24: #{recurrent_policy_forward.1} parent=0 // pred_region
    _
  $region25: #{recurrent_policy_forward.1} parent=0 // pred_fallthru
    _
  // Predicated region
  $region26: #{recurrent_policy_forward.1} parent=0 // pred_check
    _
  $region27: #{recurrent_policy_forward.1} parent=0 // pred_check_branch
    %29 = sbr.rel (0) target = $region29
  $region28: #{recurrent_policy_forward.1} parent=0 // pred_region
    _
  $region29: #{recurrent_policy_forward.1} parent=0 // pred_fallthru
    _
  // Predicated region
  $region30: #{recurrent_policy_forward.1} parent=0 // pred_check
    _
  $region31: #{recurrent_policy_forward.1} parent=0 // pred_check_branch
    %31 = sbr.rel (0) target = $region33
  $region32: #{recurrent_policy_forward.1} parent=0 // pred_region
    _
  $region33: #{recurrent_policy_forward.1} parent=0 // pred_fallthru
    _
  %v32 = vld [vmem:[%s0] sm:$0xff]
  %v33 = vld [vmem:[%s0 + $0x8] sm:$0xff]
  %v34 = vld [vmem:[%s0 + $0x10] sm:$0xff]
  %v35 = vld [vmem:[%s0 + $0x18] sm:$0xff]
  %v36 = vld [vmem:[%s0 + $0x20] sm:$0xff]
  %v37 = vld [vmem:[%s0 + $0x28] sm:$0xff]
  %v38 = vld [vmem:[%s0 + $0x30] sm:$0xff]
  %v39 = vld [vmem:[%s0 + $0x38] sm:$0xff]
  %v40 = vld [vmem:[%s3] sm:$0xff]
  %v41 = vld [vmem:[%s3 + $0x8] sm:$0xff]
  %v42 = vld [vmem:[%s5] sm:$0x1]
  %v44 = vlaneseq
  %v45 = vshrl.u32 %v44, 7
  %v46 = vsub.s32 0, %v45
  %v47 = vrot.slane %v42, %v46
  %vm49 = vcmask 130048
  %v51 = vsel %vm49, %v32, 0
  %v54 = vsel %vm49, %v33, 0
  %v57 = vsel %vm49, %v34, 0
  %v60 = vsel %vm49, %v35, 0
  %v63 = vsel %vm49, %v36, 0
  %v66 = vsel %vm49, %v37, 0
  %v69 = vsel %vm49, %v38, 0
  %v72 = vsel %vm49, %v39, 0
  %74 = vmatprep.subr.mxu0 0.0
  %75 = vmatpush1.msra.mxu0 %v40
  %76 = vmatprep.subr.mxu0 0.0
  %77 = vmatpush1.msra.mxu0 %v41
  %78 = vmatprep.subr.mxu0 0.0
  %79 = vmatpush1.msra.mxu0 0.0
  %80 = vmatprep.subr.mxu0 0.0
  %81 = vmatpush1.msra.mxu0 0.0
  %82 = vmatprep.subr.mxu0 0.0
  %83 = vmatpush1.msra.mxu0 0.0
  %84 = vmatprep.subr.mxu0 0.0
  %85 = vmatpush1.msra.mxu0 0.0
  %86 = vmatprep.subr.mxu0 0.0
  %87 = vmatpush1.msra.mxu0 0.0
  %88 = vmatprep.subr.mxu0 0.0
  %89 = vmatpush1.msra.mxu0 0.0
  %90 = vmatprep.subr.mxu0 0.0
  %91 = vmatpush1.msra.mxu0 0.0
  %92 = vmatprep.subr.mxu0 0.0
  %93 = vmatpush1.msra.mxu0 0.0
  %94 = vmatprep.subr.mxu0 0.0
  %95 = vmatpush1.msra.mxu0 0.0
  %96 = vmatprep.subr.mxu0 0.0
  %97 = vmatpush1.msra.mxu0 0.0
  %98 = vmatprep.subr.mxu0 0.0
  %99 = vmatpush1.msra.mxu0 0.0
  %100 = vmatprep.subr.mxu0 0.0
  %101 = vmatpush1.msra.mxu0 0.0
  %102 = vmatprep.subr.mxu0 0.0
  %103 = vmatpush1.msra.mxu0 0.0
  %104 = vmatprep.subr.mxu0 0.0
  %105 = vmatpush1.msra.mxu0 0.0
  %106 = vmatprep.subr.mxu0 0.0
  %107 = vmatpush1.msra.mxu0 0.0
  %108 = vmatprep.subr.mxu0 0.0
  %109 = vmatpush1.msra.mxu0 0.0
  %110 = vmatprep.subr.mxu0 0.0
  %111 = vmatpush1.msra.mxu0 0.0
  %112 = vmatprep.subr.mxu0 0.0
  %113 = vmatpush1.msra.mxu0 0.0
  %114 = vmatprep.subr.mxu0 0.0
  %115 = vmatpush1.msra.mxu0 0.0
  %116 = vmatprep.subr.mxu0 0.0
  %117 = vmatpush1.msra.mxu0 0.0
  %118 = vmatprep.subr.mxu0 0.0
  %119 = vmatpush1.msra.mxu0 0.0
  %120 = vmatprep.subr.mxu0 0.0
  %121 = vmatpush1.msra.mxu0 0.0
  %122 = vmatprep.subr.mxu0 0.0
  %123 = vmatpush1.msra.mxu0 0.0
  %124 = vmatprep.subr.mxu0 0.0
  %125 = vmatpush1.msra.mxu0 0.0
  %126 = vmatprep.subr.mxu0 0.0
  %127 = vmatpush1.msra.mxu0 0.0
  %128 = vmatprep.subr.mxu0 0.0
  %129 = vmatpush1.msra.mxu0 0.0
  %130 = vmatprep.subr.mxu0 0.0
  %131 = vmatpush1.msra.mxu0 0.0
  %132 = vmatprep.subr.mxu0 0.0
  %133 = vmatpush1.msra.mxu0 0.0
  %134 = vmatprep.subr.mxu0 0.0
  %135 = vmatpush1.msra.mxu0 0.0
  %136 = vmatprep.subr.mxu0 0.0
  %137 = vmatpush1.msra.mxu0 0.0
  %138 = vmatprep.mubr.f32.mxu0 0.0
  %139 = vmatmul.mubr.f32.gmra.mrb[0].mxu0 %v51
  %v140 = vpop.f32.mrb[0].mxu0
  %v141 = vadd.f32 %v47, %v140
  %v142 = vpop.f32.mrb[0].mxu0
  %143 = vmatprep.mubr.f32.mxu0 0.0
  %144 = vmatmul.mubr.f32.gmra.mrb[0].mxu0 %v54
  %v145 = vpop.f32.mrb[0].mxu0
  %v146 = vadd.f32 %v47, %v145
  %v147 = vpop.f32.mrb[0].mxu0
  %148 = vmatprep.mubr.f32.mxu0 0.0
  %149 = vmatmul.mubr.f32.gmra.mrb[0].mxu0 %v57
  %v150 = vpop.f32.mrb[0].mxu0
  %v151 = vadd.f32 %v47, %v150
  %v152 = vpop.f32.mrb[0].mxu0
  %153 = vmatprep.mubr.f32.mxu0 0.0
  %154 = vmatmul.mubr.f32.gmra.mrb[0].mxu0 %v60
  %v155 = vpop.f32.mrb[0].mxu0
  %v156 = vadd.f32 %v47, %v155
  %v157 = vpop.f32.mrb[0].mxu0
  %158 = vmatprep.mubr.f32.mxu0 0.0
  %159 = vmatmul.mubr.f32.gmra.mrb[0].mxu0 %v63
  %v160 = vpop.f32.mrb[0].mxu0
  %v161 = vadd.f32 %v47, %v160
  %v162 = vpop.f32.mrb[0].mxu0
  %163 = vmatprep.mubr.f32.mxu0 0.0
  %164 = vmatmul.mubr.f32.gmra.mrb[0].mxu0 %v66
  %v165 = vpop.f32.mrb[0].mxu0
  %v166 = vadd.f32 %v47, %v165
  %v167 = vpop.f32.mrb[0].mxu0
  %168 = vmatprep.mubr.f32.mxu0 0.0
  %169 = vmatmul.mubr.f32.gmra.mrb[0].mxu0 %v69
  %v170 = vpop.f32.mrb[0].mxu0
  %v171 = vadd.f32 %v47, %v170
  %v172 = vpop.f32.mrb[0].mxu0
  %173 = vmatprep.mubr.f32.mxu0 0.0
  %174 = vmatmul.mubr.f32.gmra.mrb[0].mxu0 %v72
  %v175 = vpop.f32.mrb[0].mxu0
  %v176 = vadd.f32 %v47, %v175
  %v177 = vpop.f32.mrb[0].mxu0
  %178 = vdwg.mxu0
  %179 = vst [vmem:[#allocation2] sm:$0xff] %v141
  %180 = vst [vmem:[#allocation2 + $0x8] sm:$0xff] %v146
  %181 = vst [vmem:[#allocation2 + $0x10] sm:$0xff] %v151
  %182 = vst [vmem:[#allocation2 + $0x18] sm:$0xff] %v156
  %183 = vst [vmem:[#allocation2 + $0x20] sm:$0xff] %v161
  %184 = vst [vmem:[#allocation2 + $0x28] sm:$0xff] %v166
  %185 = vst [vmem:[#allocation2 + $0x30] sm:$0xff] %v171
  %186 = vst [vmem:[#allocation2 + $0x38] sm:$0xff] %v176
  %v187 = vld [vmem:[%s4] sm:$0xff]
  %v188 = vld [vmem:[%s4 + $0x8] sm:$0xff]
  %v189 = vld [vmem:[%s4 + $0x10] sm:$0xff]
  %v190 = vld [vmem:[%s4 + $0x18] sm:$0xff]
  %v191 = vld [vmem:[%s1] sm:$0xff]
  %v192 = vld [vmem:[%s2] sm:$0xff]
  %v193 = vld [vmem:[#allocation2] sm:$0xff]
  %vm194 = vcmask 261120
  %v196 = vsel %vm194, %v191, 0
  %198 = vmatprep.subr.mxu0 0.0
  %199 = vmatpush1.msra.mxu0 %v187
  %200 = vmatprep.subr.mxu0 0.0
  %201 = vmatpush1.msra.mxu0 %v188
  %202 = vmatprep.subr.mxu0 0.0
  %203 = vmatpush1.msra.mxu0 %v189
  %204 = vmatprep.subr.mxu0 0.0
  %205 = vmatpush1.msra.mxu0 %v190
  %206 = vmatprep.subr.mxu0 0.0
  %207 = vmatpush1.msra.mxu0 0.0
  %208 = vmatprep.subr.mxu0 0.0
  %209 = vmatpush1.msra.mxu0 0.0
  %210 = vmatprep.subr.mxu0 0.0
  %211 = vmatpush1.msra.mxu0 0.0
  %212 = vmatprep.subr.mxu0 0.0
  %213 = vmatpush1.msra.mxu0 0.0
  %214 = vmatprep.subr.mxu0 0.0
  %215 = vmatpush1.msra.mxu0 0.0
  %216 = vmatprep.subr.mxu0 0.0
  %217 = vmatpush1.msra.mxu0 0.0
  %218 = vmatprep.subr.mxu0 0.0
  %219 = vmatpush1.msra.mxu0 0.0
  %220 = vmatprep.subr.mxu0 0.0
  %221 = vmatpush1.msra.mxu0 0.0
  %222 = vmatprep.subr.mxu0 0.0
  %223 = vmatpush1.msra.mxu0 0.0
  %224 = vmatprep.subr.mxu0 0.0
  %225 = vmatpush1.msra.mxu0 0.0
  %226 = vmatprep.subr.mxu0 0.0
  %227 = vmatpush1.msra.mxu0 0.0
  %228 = vmatprep.subr.mxu0 0.0
  %229 = vmatpush1.msra.mxu0 0.0
  %230 = vmatprep.subr.mxu0 0.0
  %231 = vmatpush1.msra.mxu0 0.0
  %232 = vmatprep.subr.mxu0 0.0
  %233 = vmatpush1.msra.mxu0 0.0
  %234 = vmatprep.subr.mxu0 0.0
  %235 = vmatpush1.msra.mxu0 0.0
  %236 = vmatprep.subr.mxu0 0.0
  %237 = vmatpush1.msra.mxu0 0.0
  %238 = vmatprep.subr.mxu0 0.0
  %239 = vmatpush1.msra.mxu0 0.0
  %240 = vmatprep.subr.mxu0 0.0
  %241 = vmatpush1.msra.mxu0 0.0
  %242 = vmatprep.subr.mxu0 0.0
  %243 = vmatpush1.msra.mxu0 0.0
  %244 = vmatprep.subr.mxu0 0.0
  %245 = vmatpush1.msra.mxu0 0.0
  %246 = vmatprep.subr.mxu0 0.0
  %247 = vmatpush1.msra.mxu0 0.0
  %248 = vmatprep.subr.mxu0 0.0
  %249 = vmatpush1.msra.mxu0 0.0
  %250 = vmatprep.subr.mxu0 0.0
  %251 = vmatpush1.msra.mxu0 0.0
  %252 = vmatprep.subr.mxu0 0.0
  %253 = vmatpush1.msra.mxu0 0.0
  %254 = vmatprep.subr.mxu0 0.0
  %255 = vmatpush1.msra.mxu0 0.0
  %256 = vmatprep.subr.mxu0 0.0
  %257 = vmatpush1.msra.mxu0 0.0
  %258 = vmatprep.subr.mxu0 0.0
  %259 = vmatpush1.msra.mxu0 0.0
  %260 = vmatprep.subr.mxu0 0.0
  %261 = vmatpush1.msra.mxu0 0.0
  %262 = vmatprep.mubr.f32.mxu0 0.0
  %263 = vmatmul.mubr.f32.gmra.mrb[0].mxu0 %v196
  %v264 = vpop.f32.mrb[0].mxu0
  %v265 = vadd.f32 0.0, %v264
  %v266 = vpop.f32.mrb[0].mxu0
  %267 = vdwg.mxu0
  %v268 = vadd.f32 %v193, %v265
  %v269 = vxor.u32 %v268, 2147483648
  %v270 = vmul.f32 %v269, 1.442695
  %v271 = vpow.pop %v270
  %v272 = vadd.f32 %v271, 1.0
  %v273 = vrcp.pop %v272
  %v274 = vmul.f32 1.0, %v273
  %v275 = vtanh.pop %v268
  %277 = vrot.lane.b32.xlu0 %v192, 32
  %v278 = vpop.permute.xlu0 %277
  %v280 = vmul.f32 %v274, %v278
  %282 = vrot.lane.b32.xlu0 %v275, 64
  %v283 = vpop.permute.xlu0 %282
  %v285 = vmul.f32 %v274, %v283
  %287 = vrot.lane.b32.xlu0 %v285, 32
  %v288 = vpop.permute.xlu0 %287
  %v290 = vadd.f32 %v280, %v288
  %v291 = vtanh.pop %v290
  %293 = vrot.lane.b32.xlu0 %v291, 64
  %v294 = vpop.permute.xlu0 %293
  %v296 = vmul.f32 %v274, %v294
  %298 = vrot.lane.b32.xlu0 %v296, 32
  %v299 = vpop.permute.xlu0 %298
  %301 = vst.msk [vmem:[#allocation3] sm:$0xff] %vm194, %v299
  %v302 = vld [vmem:[#allocation2 + $0x8] sm:$0xff]
  %v303 = vsel %vm194, %v299, 0
  %305 = vmatprep.subr.mxu0 0.0
  %306 = vmatpush1.msra.mxu0 %v187
  %307 = vmatprep.subr.mxu0 0.0
  %308 = vmatpush1.msra.mxu0 %v188
  %309 = vmatprep.subr.mxu0 0.0
  %310 = vmatpush1.msra.mxu0 %v189
  %311 = vmatprep.subr.mxu0 0.0
  %312 = vmatpush1.msra.mxu0 %v190
  %313 = vmatprep.subr.mxu0 0.0
  %314 = vmatpush1.msra.mxu0 0.0
  %315 = vmatprep.subr.mxu0 0.0
  %316 = vmatpush1.msra.mxu0 0.0
  %317 = vmatprep.subr.mxu0 0.0
  %318 = vmatpush1.msra.mxu0 0.0
  %319 = vmatprep.subr.mxu0 0.0
  %320 = vmatpush1.msra.mxu0 0.0
  %321 = vmatprep.subr.mxu0 0.0
  %322 = vmatpush1.msra.mxu0 0.0
  %323 = vmatprep.subr.mxu0 0.0
  %324 = vmatpush1.msra.mxu0 0.0
  %325 = vmatprep.subr.mxu0 0.0
  %326 = vmatpush1.msra.mxu0 0.0
  %327 = vmatprep.subr.mxu0 0.0
  %328 = vmatpush1.msra.mxu0 0.0
  %329 = vmatprep.subr.mxu0 0.0
  %330 = vmatpush1.msra.mxu0 0.0
  %331 = vmatprep.subr.mxu0 0.0
  %332 = vmatpush1.msra.mxu0 0.0
  %333 = vmatprep.subr.mxu0 0.0
  %334 = vmatpush1.msra.mxu0 0.0
  %335 = vmatprep.subr.mxu0 0.0
  %336 = vmatpush1.msra.mxu0 0.0
  %337 = vmatprep.subr.mxu0 0.0
  %338 = vmatpush1.msra.mxu0 0.0
  %339 = vmatprep.subr.mxu0 0.0
  %340 = vmatpush1.msra.mxu0 0.0
  %341 = vmatprep.subr.mxu0 0.0
  %342 = vmatpush1.msra.mxu0 0.0
  %343 = vmatprep.subr.mxu0 0.0
  %344 = vmatpush1.msra.mxu0 0.0
  %345 = vmatprep.subr.mxu0 0.0
  %346 = vmatpush1.msra.mxu0 0.0
  %347 = vmatprep.subr.mxu0 0.0
  %348 = vmatpush1.msra.mxu0 0.0
  %349 = vmatprep.subr.mxu0 0.0
  %350 = vmatpush1.msra.mxu0 0.0
  %351 = vmatprep.subr.mxu0 0.0
  %352 = vmatpush1.msra.mxu0 0.0
  %353 = vmatprep.subr.mxu0 0.0
  %354 = vmatpush1.msra.mxu0 0.0
  %355 = vmatprep.subr.mxu0 0.0
  %356 = vmatpush1.msra.mxu0 0.0
  %357 = vmatprep.subr.mxu0 0.0
  %358 = vmatpush1.msra.mxu0 0.0
  %359 = vmatprep.subr.mxu0 0.0
  %360 = vmatpush1.msra.mxu0 0.0
  %361 = vmatprep.subr.mxu0 0.0
  %362 = vmatpush1.msra.mxu0 0.0
  %363 = vmatprep.subr.mxu0 0.0
  %364 = vmatpush1.msra.mxu0 0.0
  %365 = vmatprep.subr.mxu0 0.0
  %366 = vmatpush1.msra.mxu0 0.0
  %367 = vmatprep.subr.mxu0 0.0
  %368 = vmatpush1.msra.mxu0 0.0
  %369 = vmatprep.mubr.f32.mxu0 0.0
  %370 = vmatmul.mubr.f32.gmra.mrb[0].mxu0 %v303
  %v371 = vpop.f32.mrb[0].mxu0
  %v372 = vadd.f32 0.0, %v371
  %v373 = vpop.f32.mrb[0].mxu0
  %374 = vdwg.mxu0
  %v375 = vadd.f32 %v302, %v372
  %v376 = vxor.u32 %v375, 2147483648
  %v377 = vmul.f32 %v376, 1.442695
  %v378 = vpow.pop %v377
  %v379 = vadd.f32 %v378, 1.0
  %v380 = vrcp.pop %v379
  %v381 = vmul.f32 1.0, %v380
  %v382 = vtanh.pop %v375
  %v383 = vmul.f32 %v381, %v290
  %385 = vrot.lane.b32.xlu0 %v382, 64
  %v386 = vpop.permute.xlu0 %385
  %v388 = vmul.f32 %v381, %v386
  %390 = vrot.lane.b32.xlu0 %v388, 32
  %v391 = vpop.permute.xlu0 %390
  %v393 = vadd.f32 %v383, %v391
  %v394 = vtanh.pop %v393
  %396 = vrot.lane.b32.xlu0 %v394, 64
  %v397 = vpop.permute.xlu0 %396
  %v399 = vmul.f32 %v381, %v397
  %401 = vrot.lane.b32.xlu0 %v399, 32
  %v402 = vpop.permute.xlu0 %401
  %404 = vst.msk [vmem:[#allocation3 + $0x8] sm:$0xff] %vm194, %v402
  %v405 = vld [vmem:[#allocation2 + $0x10] sm:$0xff]
  %v406 = vsel %vm194, %v402, 0
  %408 = vmatprep.subr.mxu0 0.0
  %409 = vmatpush1.msra.mxu0 %v187
  %410 = vmatprep.subr.mxu0 0.0
  %411 = vmatpush1.msra.mxu0 %v188
  %412 = vmatprep.subr.mxu0 0.0
  %413 = vmatpush1.msra.mxu0 %v189
  %414 = vmatprep.subr.mxu0 0.0
  %415 = vmatpush1.msra.mxu0 %v190
  %416 = vmatprep.subr.mxu0 0.0
  %417 = vmatpush1.msra.mxu0 0.0
  %418 = vmatprep.subr.mxu0 0.0
  %419 = vmatpush1.msra.mxu0 0.0
  %420 = vmatprep.subr.mxu0 0.0
  %421 = vmatpush1.msra.mxu0 0.0
  %422 = vmatprep.subr.mxu0 0.0
  %423 = vmatpush1.msra.mxu0 0.0
  %424 = vmatprep.subr.mxu0 0.0
  %425 = vmatpush1.msra.mxu0 0.0
  %426 = vmatprep.subr.mxu0 0.0
  %427 = vmatpush1.msra.mxu0 0.0
  %428 = vmatprep.subr.mxu0 0.0
  %429 = vmatpush1.msra.mxu0 0.0
  %430 = vmatprep.subr.mxu0 0.0
  %431 = vmatpush1.msra.mxu0 0.0
  %432 = vmatprep.subr.mxu0 0.0
  %433 = vmatpush1.msra.mxu0 0.0
  %434 = vmatprep.subr.mxu0 0.0
  %435 = vmatpush1.msra.mxu0 0.0
  %436 = vmatprep.subr.mxu0 0.0
  %437 = vmatpush1.msra.mxu0 0.0
  %438 = vmatprep.subr.mxu0 0.0
  %439 = vmatpush1.msra.mxu0 0.0
  %440 = vmatprep.subr.mxu0 0.0
  %441 = vmatpush1.msra.mxu0 0.0
  %442 = vmatprep.subr.mxu0 0.0
  %443 = vmatpush1.msra.mxu0 0.0
  %444 = vmatprep.subr.mxu0 0.0
  %445 = vmatpush1.msra.mxu0 0.0
  %446 = vmatprep.subr.mxu0 0.0
  %447 = vmatpush1.msra.mxu0 0.0
  %448 = vmatprep.subr.mxu0 0.0
  %449 = vmatpush1.msra.mxu0 0.0
  %450 = vmatprep.subr.mxu0 0.0
  %451 = vmatpush1.msra.mxu0 0.0
  %452 = vmatprep.subr.mxu0 0.0
  %453 = vmatpush1.msra.mxu0 0.0
  %454 = vmatprep.subr.mxu0 0.0
  %455 = vmatpush1.msra.mxu0 0.0
  %456 = vmatprep.subr.mxu0 0.0
  %457 = vmatpush1.msra.mxu0 0.0
  %458 = vmatprep.subr.mxu0 0.0
  %459 = vmatpush1.msra.mxu0 0.0
  %460 = vmatprep.subr.mxu0 0.0
  %461 = vmatpush1.msra.mxu0 0.0
  %462 = vmatprep.subr.mxu0 0.0
  %463 = vmatpush1.msra.mxu0 0.0
  %464 = vmatprep.subr.mxu0 0.0
  %465 = vmatpush1.msra.mxu0 0.0
  %466 = vmatprep.subr.mxu0 0.0
  %467 = vmatpush1.msra.mxu0 0.0
  %468 = vmatprep.subr.mxu0 0.0
  %469 = vmatpush1.msra.mxu0 0.0
  %470 = vmatprep.subr.mxu0 0.0
  %471 = vmatpush1.msra.mxu0 0.0
  %472 = vmatprep.mubr.f32.mxu0 0.0
  %473 = vmatmul.mubr.f32.gmra.mrb[0].mxu0 %v406
  %v474 = vpop.f32.mrb[0].mxu0
  %v475 = vadd.f32 0.0, %v474
  %v476 = vpop.f32.mrb[0].mxu0
  %477 = vdwg.mxu0
  %v478 = vadd.f32 %v405, %v475
  %v479 = vxor.u32 %v478, 2147483648
  %v480 = vmul.f32 %v479, 1.442695
  %v481 = vpow.pop %v480
  %v482 = vadd.f32 %v481, 1.0
  %v483 = vrcp.pop %v482
  %v484 = vmul.f32 1.0, %v483
  %v485 = vtanh.pop %v478
  %v486 = vmul.f32 %v484, %v393
  %488 = vrot.lane.b32.xlu0 %v485, 64
  %v489 = vpop.permute.xlu0 %488
  %v491 = vmul.f32 %v484, %v489
  %493 = vrot.lane.b32.xlu0 %v491, 32
  %v494 = vpop.permute.xlu0 %493
  %v496 = vadd.f32 %v486, %v494
  %v497 = vtanh.pop %v496
  %499 = vrot.lane.b32.xlu0 %v497, 64
  %v500 = vpop.permute.xlu0 %499
  %v502 = vmul.f32 %v484, %v500
  %504 = vrot.lane.b32.xlu0 %v502, 32
  %v505 = vpop.permute.xlu0 %504
  %507 = vst.msk [vmem:[#allocation3 + $0x10] sm:$0xff] %vm194, %v505
  %v508 = vld [vmem:[#allocation2 + $0x18] sm:$0xff]
  %v509 = vsel %vm194, %v505, 0
  %511 = vmatprep.subr.mxu0 0.0
  %512 = vmatpush1.msra.mxu0 %v187
  %513 = vmatprep.subr.mxu0 0.0
  %514 = vmatpush1.msra.mxu0 %v188
  %515 = vmatprep.subr.mxu0 0.0
  %516 = vmatpush1.msra.mxu0 %v189
  %517 = vmatprep.subr.mxu0 0.0
  %518 = vmatpush1.msra.mxu0 %v190
  %519 = vmatprep.subr.mxu0 0.0
  %520 = vmatpush1.msra.mxu0 0.0
  %521 = vmatprep.subr.mxu0 0.0
  %522 = vmatpush1.msra.mxu0 0.0
  %523 = vmatprep.subr.mxu0 0.0
  %524 = vmatpush1.msra.mxu0 0.0
  %525 = vmatprep.subr.mxu0 0.0
  %526 = vmatpush1.msra.mxu0 0.0
  %527 = vmatprep.subr.mxu0 0.0
  %528 = vmatpush1.msra.mxu0 0.0
  %529 = vmatprep.subr.mxu0 0.0
  %530 = vmatpush1.msra.mxu0 0.0
  %531 = vmatprep.subr.mxu0 0.0
  %532 = vmatpush1.msra.mxu0 0.0
  %533 = vmatprep.subr.mxu0 0.0
  %534 = vmatpush1.msra.mxu0 0.0
  %535 = vmatprep.subr.mxu0 0.0
  %536 = vmatpush1.msra.mxu0 0.0
  %537 = vmatprep.subr.mxu0 0.0
  %538 = vmatpush1.msra.mxu0 0.0
  %539 = vmatprep.subr.mxu0 0.0
  %540 = vmatpush1.msra.mxu0 0.0
  %541 = vmatprep.subr.mxu0 0.0
  %542 = vmatpush1.msra.mxu0 0.0
  %543 = vmatprep.subr.mxu0 0.0
  %544 = vmatpush1.msra.mxu0 0.0
  %545 = vmatprep.subr.mxu0 0.0
  %546 = vmatpush1.msra.mxu0 0.0
  %547 = vmatprep.subr.mxu0 0.0
  %548 = vmatpush1.msra.mxu0 0.0
  %549 = vmatprep.subr.mxu0 0.0
  %550 = vmatpush1.msra.mxu0 0.0
  %551 = vmatprep.subr.mxu0 0.0
  %552 = vmatpush1.msra.mxu0 0.0
  %553 = vmatprep.subr.mxu0 0.0
  %554 = vmatpush1.msra.mxu0 0.0
  %555 = vmatprep.subr.mxu0 0.0
  %556 = vmatpush1.msra.mxu0 0.0
  %557 = vmatprep.subr.mxu0 0.0
  %558 = vmatpush1.msra.mxu0 0.0
  %559 = vmatprep.subr.mxu0 0.0
  %560 = vmatpush1.msra.mxu0 0.0
  %561 = vmatprep.subr.mxu0 0.0
  %562 = vmatpush1.msra.mxu0 0.0
  %563 = vmatprep.subr.mxu0 0.0
  %564 = vmatpush1.msra.mxu0 0.0
  %565 = vmatprep.subr.mxu0 0.0
  %566 = vmatpush1.msra.mxu0 0.0
  %567 = vmatprep.subr.mxu0 0.0
  %568 = vmatpush1.msra.mxu0 0.0
  %569 = vmatprep.subr.mxu0 0.0
  %570 = vmatpush1.msra.mxu0 0.0
  %571 = vmatprep.subr.mxu0 0.0
  %572 = vmatpush1.msra.mxu0 0.0
  %573 = vmatprep.subr.mxu0 0.0
  %574 = vmatpush1.msra.mxu0 0.0
  %575 = vmatprep.mubr.f32.mxu0 0.0
  %576 = vmatmul.mubr.f32.gmra.mrb[0].mxu0 %v509
  %v577 = vpop.f32.mrb[0].mxu0
  %v578 = vadd.f32 0.0, %v577
  %v579 = vpop.f32.mrb[0].mxu0
  %580 = vdwg.mxu0
  %v581 = vadd.f32 %v508, %v578
  %v582 = vxor.u32 %v581, 2147483648
  %v583 = vmul.f32 %v582, 1.442695
  %v584 = vpow.pop %v583
  %v585 = vadd.f32 %v584, 1.0
  %v586 = vrcp.pop %v585
  %v587 = vmul.f32 1.0, %v586
  %v588 = vtanh.pop %v581
  %v589 = vmul.f32 %v587, %v496
  %591 = vrot.lane.b32.xlu0 %v588, 64
  %v592 = vpop.permute.xlu0 %591
  %v594 = vmul.f32 %v587, %v592
  %596 = vrot.lane.b32.xlu0 %v594, 32
  %v597 = vpop.permute.xlu0 %596
  %v599 = vadd.f32 %v589, %v597
  %v600 = vtanh.pop %v599
  %602 = vrot.lane.b32.xlu0 %v600, 64
  %v603 = vpop.permute.xlu0 %602
  %v605 = vmul.f32 %v587, %v603
  %607 = vrot.lane.b32.xlu0 %v605, 32
  %v608 = vpop.permute.xlu0 %607
  %610 = vst.msk [vmem:[#allocation3 + $0x18] sm:$0xff] %vm194, %v608
  %v611 = vld [vmem:[#allocation2 + $0x20] sm:$0xff]
  %v612 = vsel %vm194, %v608, 0
  %614 = vmatprep.subr.mxu0 0.0
  %615 = vmatpush1.msra.mxu0 %v187
  %616 = vmatprep.subr.mxu0 0.0
  %617 = vmatpush1.msra.mxu0 %v188
  %618 = vmatprep.subr.mxu0 0.0
  %619 = vmatpush1.msra.mxu0 %v189
  %620 = vmatprep.subr.mxu0 0.0
  %621 = vmatpush1.msra.mxu0 %v190
  %622 = vmatprep.subr.mxu0 0.0
  %623 = vmatpush1.msra.mxu0 0.0
  %624 = vmatprep.subr.mxu0 0.0
  %625 = vmatpush1.msra.mxu0 0.0
  %626 = vmatprep.subr.mxu0 0.0
  %627 = vmatpush1.msra.mxu0 0.0
  %628 = vmatprep.subr.mxu0 0.0
  %629 = vmatpush1.msra.mxu0 0.0
  %630 = vmatprep.subr.mxu0 0.0
  %631 = vmatpush1.msra.mxu0 0.0
  %632 = vmatprep.subr.mxu0 0.0
  %633 = vmatpush1.msra.mxu0 0.0
  %634 = vmatprep.subr.mxu0 0.0
  %635 = vmatpush1.msra.mxu0 0.0
  %636 = vmatprep.subr.mxu0 0.0
  %637 = vmatpush1.msra.mxu0 0.0
  %638 = vmatprep.subr.mxu0 0.0
  %639 = vmatpush1.msra.mxu0 0.0
  %640 = vmatprep.subr.mxu0 0.0
  %641 = vmatpush1.msra.mxu0 0.0
  %642 = vmatprep.subr.mxu0 0.0
  %643 = vmatpush1.msra.mxu0 0.0
  %644 = vmatprep.subr.mxu0 0.0
  %645 = vmatpush1.msra.mxu0 0.0
  %646 = vmatprep.subr.mxu0 0.0
  %647 = vmatpush1.msra.mxu0 0.0
  %648 = vmatprep.subr.mxu0 0.0
  %649 = vmatpush1.msra.mxu0 0.0
  %650 = vmatprep.subr.mxu0 0.0
  %651 = vmatpush1.msra.mxu0 0.0
  %652 = vmatprep.subr.mxu0 0.0
  %653 = vmatpush1.msra.mxu0 0.0
  %654 = vmatprep.subr.mxu0 0.0
  %655 = vmatpush1.msra.mxu0 0.0
  %656 = vmatprep.subr.mxu0 0.0
  %657 = vmatpush1.msra.mxu0 0.0
  %658 = vmatprep.subr.mxu0 0.0
  %659 = vmatpush1.msra.mxu0 0.0
  %660 = vmatprep.subr.mxu0 0.0
  %661 = vmatpush1.msra.mxu0 0.0
  %662 = vmatprep.subr.mxu0 0.0
  %663 = vmatpush1.msra.mxu0 0.0
  %664 = vmatprep.subr.mxu0 0.0
  %665 = vmatpush1.msra.mxu0 0.0
  %666 = vmatprep.subr.mxu0 0.0
  %667 = vmatpush1.msra.mxu0 0.0
  %668 = vmatprep.subr.mxu0 0.0
  %669 = vmatpush1.msra.mxu0 0.0
  %670 = vmatprep.subr.mxu0 0.0
  %671 = vmatpush1.msra.mxu0 0.0
  %672 = vmatprep.subr.mxu0 0.0
  %673 = vmatpush1.msra.mxu0 0.0
  %674 = vmatprep.subr.mxu0 0.0
  %675 = vmatpush1.msra.mxu0 0.0
  %676 = vmatprep.subr.mxu0 0.0
  %677 = vmatpush1.msra.mxu0 0.0
  %678 = vmatprep.mubr.f32.mxu0 0.0
  %679 = vmatmul.mubr.f32.gmra.mrb[0].mxu0 %v612
  %v680 = vpop.f32.mrb[0].mxu0
  %v681 = vadd.f32 0.0, %v680
  %v682 = vpop.f32.mrb[0].mxu0
  %683 = vdwg.mxu0
  %v684 = vadd.f32 %v611, %v681
  %v685 = vxor.u32 %v684, 2147483648
  %v686 = vmul.f32 %v685, 1.442695
  %v687 = vpow.pop %v686
  %v688 = vadd.f32 %v687, 1.0
  %v689 = vrcp.pop %v688
  %v690 = vmul.f32 1.0, %v689
  %v691 = vtanh.pop %v684
  %v692 = vmul.f32 %v690, %v599
  %694 = vrot.lane.b32.xlu0 %v691, 64
  %v695 = vpop.permute.xlu0 %694
  %v697 = vmul.f32 %v690, %v695
  %699 = vrot.lane.b32.xlu0 %v697, 32
  %v700 = vpop.permute.xlu0 %699
  %v702 = vadd.f32 %v692, %v700
  %v703 = vtanh.pop %v702
  %705 = vrot.lane.b32.xlu0 %v703, 64
  %v706 = vpop.permute.xlu0 %705
  %v708 = vmul.f32 %v690, %v706
  %710 = vrot.lane.b32.xlu0 %v708, 32
  %v711 = vpop.permute.xlu0 %710
  %713 = vst.msk [vmem:[#allocation3 + $0x20] sm:$0xff] %vm194, %v711
  %v714 = vld [vmem:[#allocation2 + $0x28] sm:$0xff]
  %v715 = vsel %vm194, %v711, 0
  %717 = vmatprep.subr.mxu0 0.0
  %718 = vmatpush1.msra.mxu0 %v187
  %719 = vmatprep.subr.mxu0 0.0
  %720 = vmatpush1.msra.mxu0 %v188
  %721 = vmatprep.subr.mxu0 0.0
  %722 = vmatpush1.msra.mxu0 %v189
  %723 = vmatprep.subr.mxu0 0.0
  %724 = vmatpush1.msra.mxu0 %v190
  %725 = vmatprep.subr.mxu0 0.0
  %726 = vmatpush1.msra.mxu0 0.0
  %727 = vmatprep.subr.mxu0 0.0
  %728 = vmatpush1.msra.mxu0 0.0
  %729 = vmatprep.subr.mxu0 0.0
  %730 = vmatpush1.msra.mxu0 0.0
  %731 = vmatprep.subr.mxu0 0.0
  %732 = vmatpush1.msra.mxu0 0.0
  %733 = vmatprep.subr.mxu0 0.0
  %734 = vmatpush1.msra.mxu0 0.0
  %735 = vmatprep.subr.mxu0 0.0
  %736 = vmatpush1.msra.mxu0 0.0
  %737 = vmatprep.subr.mxu0 0.0
  %738 = vmatpush1.msra.mxu0 0.0
  %739 = vmatprep.subr.mxu0 0.0
  %740 = vmatpush1.msra.mxu0 0.0
  %741 = vmatprep.subr.mxu0 0.0
  %742 = vmatpush1.msra.mxu0 0.0
  %743 = vmatprep.subr.mxu0 0.0
  %744 = vmatpush1.msra.mxu0 0.0
  %745 = vmatprep.subr.mxu0 0.0
  %746 = vmatpush1.msra.mxu0 0.0
  %747 = vmatprep.subr.mxu0 0.0
  %748 = vmatpush1.msra.mxu0 0.0
  %749 = vmatprep.subr.mxu0 0.0
  %750 = vmatpush1.msra.mxu0 0.0
  %751 = vmatprep.subr.mxu0 0.0
  %752 = vmatpush1.msra.mxu0 0.0
  %753 = vmatprep.subr.mxu0 0.0
  %754 = vmatpush1.msra.mxu0 0.0
  %755 = vmatprep.subr.mxu0 0.0
  %756 = vmatpush1.msra.mxu0 0.0
  %757 = vmatprep.subr.mxu0 0.0
  %758 = vmatpush1.msra.mxu0 0.0
  %759 = vmatprep.subr.mxu0 0.0
  %760 = vmatpush1.msra.mxu0 0.0
  %761 = vmatprep.subr.mxu0 0.0
  %762 = vmatpush1.msra.mxu0 0.0
  %763 = vmatprep.subr.mxu0 0.0
  %764 = vmatpush1.msra.mxu0 0.0
  %765 = vmatprep.subr.mxu0 0.0
  %766 = vmatpush1.msra.mxu0 0.0
  %767 = vmatprep.subr.mxu0 0.0
  %768 = vmatpush1.msra.mxu0 0.0
  %769 = vmatprep.subr.mxu0 0.0
  %770 = vmatpush1.msra.mxu0 0.0
  %771 = vmatprep.subr.mxu0 0.0
  %772 = vmatpush1.msra.mxu0 0.0
  %773 = vmatprep.subr.mxu0 0.0
  %774 = vmatpush1.msra.mxu0 0.0
  %775 = vmatprep.subr.mxu0 0.0
  %776 = vmatpush1.msra.mxu0 0.0
  %777 = vmatprep.subr.mxu0 0.0
  %778 = vmatpush1.msra.mxu0 0.0
  %779 = vmatprep.subr.mxu0 0.0
  %780 = vmatpush1.msra.mxu0 0.0
  %781 = vmatprep.mubr.f32.mxu0 0.0
  %782 = vmatmul.mubr.f32.gmra.mrb[0].mxu0 %v715
  %v783 = vpop.f32.mrb[0].mxu0
  %v784 = vadd.f32 0.0, %v783
  %v785 = vpop.f32.mrb[0].mxu0
  %786 = vdwg.mxu0
  %v787 = vadd.f32 %v714, %v784
  %v788 = vxor.u32 %v787, 2147483648
  %v789 = vmul.f32 %v788, 1.442695
  %v790 = vpow.pop %v789
  %v791 = vadd.f32 %v790, 1.0
  %v792 = vrcp.pop %v791
  %v793 = vmul.f32 1.0, %v792
  %v794 = vtanh.pop %v787
  %v795 = vmul.f32 %v793, %v702
  %797 = vrot.lane.b32.xlu0 %v794, 64
  %v798 = vpop.permute.xlu0 %797
  %v800 = vmul.f32 %v793, %v798
  %802 = vrot.lane.b32.xlu0 %v800, 32
  %v803 = vpop.permute.xlu0 %802
  %v805 = vadd.f32 %v795, %v803
  %v806 = vtanh.pop %v805
  %808 = vrot.lane.b32.xlu0 %v806, 64
  %v809 = vpop.permute.xlu0 %808
  %v811 = vmul.f32 %v793, %v809
  %813 = vrot.lane.b32.xlu0 %v811, 32
  %v814 = vpop.permute.xlu0 %813
  %816 = vst.msk [vmem:[#allocation3 + $0x28] sm:$0xff] %vm194, %v814
  %v817 = vld [vmem:[#allocation2 + $0x30] sm:$0xff]
  %v818 = vsel %vm194, %v814, 0
  %820 = vmatprep.subr.mxu0 0.0
  %821 = vmatpush1.msra.mxu0 %v187
  %822 = vmatprep.subr.mxu0 0.0
  %823 = vmatpush1.msra.mxu0 %v188
  %824 = vmatprep.subr.mxu0 0.0
  %825 = vmatpush1.msra.mxu0 %v189
  %826 = vmatprep.subr.mxu0 0.0
  %827 = vmatpush1.msra.mxu0 %v190
  %828 = vmatprep.subr.mxu0 0.0
  %829 = vmatpush1.msra.mxu0 0.0
  %830 = vmatprep.subr.mxu0 0.0
  %831 = vmatpush1.msra.mxu0 0.0
  %832 = vmatprep.subr.mxu0 0.0
  %833 = vmatpush1.msra.mxu0 0.0
  %834 = vmatprep.subr.mxu0 0.0
  %835 = vmatpush1.msra.mxu0 0.0
  %836 = vmatprep.subr.mxu0 0.0
  %837 = vmatpush1.msra.mxu0 0.0
  %838 = vmatprep.subr.mxu0 0.0
  %839 = vmatpush1.msra.mxu0 0.0
  %840 = vmatprep.subr.mxu0 0.0
  %841 = vmatpush1.msra.mxu0 0.0
  %842 = vmatprep.subr.mxu0 0.0
  %843 = vmatpush1.msra.mxu0 0.0
  %844 = vmatprep.subr.mxu0 0.0
  %845 = vmatpush1.msra.mxu0 0.0
  %846 = vmatprep.subr.mxu0 0.0
  %847 = vmatpush1.msra.mxu0 0.0
  %848 = vmatprep.subr.mxu0 0.0
  %849 = vmatpush1.msra.mxu0 0.0
  %850 = vmatprep.subr.mxu0 0.0
  %851 = vmatpush1.msra.mxu0 0.0
  %852 = vmatprep.subr.mxu0 0.0
  %853 = vmatpush1.msra.mxu0 0.0
  %854 = vmatprep.subr.mxu0 0.0
  %855 = vmatpush1.msra.mxu0 0.0
  %856 = vmatprep.subr.mxu0 0.0
  %857 = vmatpush1.msra.mxu0 0.0
  %858 = vmatprep.subr.mxu0 0.0
  %859 = vmatpush1.msra.mxu0 0.0
  %860 = vmatprep.subr.mxu0 0.0
  %861 = vmatpush1.msra.mxu0 0.0
  %862 = vmatprep.subr.mxu0 0.0
  %863 = vmatpush1.msra.mxu0 0.0
  %864 = vmatprep.subr.mxu0 0.0
  %865 = vmatpush1.msra.mxu0 0.0
  %866 = vmatprep.subr.mxu0 0.0
  %867 = vmatpush1.msra.mxu0 0.0
  %868 = vmatprep.subr.mxu0 0.0
  %869 = vmatpush1.msra.mxu0 0.0
  %870 = vmatprep.subr.mxu0 0.0
  %871 = vmatpush1.msra.mxu0 0.0
  %872 = vmatprep.subr.mxu0 0.0
  %873 = vmatpush1.msra.mxu0 0.0
  %874 = vmatprep.subr.mxu0 0.0
  %875 = vmatpush1.msra.mxu0 0.0
  %876 = vmatprep.subr.mxu0 0.0
  %877 = vmatpush1.msra.mxu0 0.0
  %878 = vmatprep.subr.mxu0 0.0
  %879 = vmatpush1.msra.mxu0 0.0
  %880 = vmatprep.subr.mxu0 0.0
  %881 = vmatpush1.msra.mxu0 0.0
  %882 = vmatprep.subr.mxu0 0.0
  %883 = vmatpush1.msra.mxu0 0.0
  %884 = vmatprep.mubr.f32.mxu0 0.0
  %885 = vmatmul.mubr.f32.gmra.mrb[0].mxu0 %v818
  %v886 = vpop.f32.mrb[0].mxu0
  %v887 = vadd.f32 0.0, %v886
  %v888 = vpop.f32.mrb[0].mxu0
  %889 = vdwg.mxu0
  %v890 = vadd.f32 %v817, %v887
  %v891 = vxor.u32 %v890, 2147483648
  %v892 = vmul.f32 %v891, 1.442695
  %v893 = vpow.pop %v892
  %v894 = vadd.f32 %v893, 1.0
  %v895 = vrcp.pop %v894
  %v896 = vmul.f32 1.0, %v895
  %v897 = vtanh.pop %v890
  %v898 = vmul.f32 %v896, %v805
  %900 = vrot.lane.b32.xlu0 %v897, 64
  %v901 = vpop.permute.xlu0 %900
  %v903 = vmul.f32 %v896, %v901
  %905 = vrot.lane.b32.xlu0 %v903, 32
  %v906 = vpop.permute.xlu0 %905
  %v908 = vadd.f32 %v898, %v906
  %v909 = vtanh.pop %v908
  %911 = vrot.lane.b32.xlu0 %v909, 64
  %v912 = vpop.permute.xlu0 %911
  %v914 = vmul.f32 %v896, %v912
  %916 = vrot.lane.b32.xlu0 %v914, 32
  %v917 = vpop.permute.xlu0 %916
  %919 = vst.msk [vmem:[#allocation3 + $0x30] sm:$0xff] %vm194, %v917
  %v920 = vld [vmem:[#allocation2 + $0x38] sm:$0xff]
  %v921 = vsel %vm194, %v917, 0
  %923 = vmatprep.subr.mxu0 0.0
  %924 = vmatpush1.msra.mxu0 %v187
  %925 = vmatprep.subr.mxu0 0.0
  %926 = vmatpush1.msra.mxu0 %v188
  %927 = vmatprep.subr.mxu0 0.0
  %928 = vmatpush1.msra.mxu0 %v189
  %929 = vmatprep.subr.mxu0 0.0
  %930 = vmatpush1.msra.mxu0 %v190
  %931 = vmatprep.subr.mxu0 0.0
  %932 = vmatpush1.msra.mxu0 0.0
  %933 = vmatprep.subr.mxu0 0.0
  %934 = vmatpush1.msra.mxu0 0.0
  %935 = vmatprep.subr.mxu0 0.0
  %936 = vmatpush1.msra.mxu0 0.0
  %937 = vmatprep.subr.mxu0 0.0
  %938 = vmatpush1.msra.mxu0 0.0
  %939 = vmatprep.subr.mxu0 0.0
  %940 = vmatpush1.msra.mxu0 0.0
  %941 = vmatprep.subr.mxu0 0.0
  %942 = vmatpush1.msra.mxu0 0.0
  %943 = vmatprep.subr.mxu0 0.0
  %944 = vmatpush1.msra.mxu0 0.0
  %945 = vmatprep.subr.mxu0 0.0
  %946 = vmatpush1.msra.mxu0 0.0
  %947 = vmatprep.subr.mxu0 0.0
  %948 = vmatpush1.msra.mxu0 0.0
  %949 = vmatprep.subr.mxu0 0.0
  %950 = vmatpush1.msra.mxu0 0.0
  %951 = vmatprep.subr.mxu0 0.0
  %952 = vmatpush1.msra.mxu0 0.0
  %953 = vmatprep.subr.mxu0 0.0
  %954 = vmatpush1.msra.mxu0 0.0
  %955 = vmatprep.subr.mxu0 0.0
  %956 = vmatpush1.msra.mxu0 0.0
  %957 = vmatprep.subr.mxu0 0.0
  %958 = vmatpush1.msra.mxu0 0.0
  %959 = vmatprep.subr.mxu0 0.0
  %960 = vmatpush1.msra.mxu0 0.0
  %961 = vmatprep.subr.mxu0 0.0
  %962 = vmatpush1.msra.mxu0 0.0
  %963 = vmatprep.subr.mxu0 0.0
  %964 = vmatpush1.msra.mxu0 0.0
  %965 = vmatprep.subr.mxu0 0.0
  %966 = vmatpush1.msra.mxu0 0.0
  %967 = vmatprep.subr.mxu0 0.0
  %968 = vmatpush1.msra.mxu0 0.0
  %969 = vmatprep.subr.mxu0 0.0
  %970 = vmatpush1.msra.mxu0 0.0
  %971 = vmatprep.subr.mxu0 0.0
  %972 = vmatpush1.msra.mxu0 0.0
  %973 = vmatprep.subr.mxu0 0.0
  %974 = vmatpush1.msra.mxu0 0.0
  %975 = vmatprep.subr.mxu0 0.0
  %976 = vmatpush1.msra.mxu0 0.0
  %977 = vmatprep.subr.mxu0 0.0
  %978 = vmatpush1.msra.mxu0 0.0
  %979 = vmatprep.subr.mxu0 0.0
  %980 = vmatpush1.msra.mxu0 0.0
  %981 = vmatprep.subr.mxu0 0.0
  %982 = vmatpush1.msra.mxu0 0.0
  %983 = vmatprep.subr.mxu0 0.0
  %984 = vmatpush1.msra.mxu0 0.0
  %985 = vmatprep.subr.mxu0 0.0
  %986 = vmatpush1.msra.mxu0 0.0
  %987 = vmatprep.mubr.f32.mxu0 0.0
  %988 = vmatmul.mubr.f32.gmra.mrb[0].mxu0 %v921
  %v989 = vpop.f32.mrb[0].mxu0
  %v990 = vadd.f32 0.0, %v989
  %v991 = vpop.f32.mrb[0].mxu0
  %992 = vdwg.mxu0
  %v993 = vadd.f32 %v920, %v990
  %v994 = vxor.u32 %v993, 2147483648
  %v995 = vmul.f32 %v994, 1.442695
  %v996 = vpow.pop %v995
  %v997 = vadd.f32 %v996, 1.0
  %v998 = vrcp.pop %v997
  %v999 = vmul.f32 1.0, %v998
  %v1000 = vtanh.pop %v993
  %v1001 = vmul.f32 %v999, %v908
  %1003 = vrot.lane.b32.xlu0 %v1000, 64
  %v1004 = vpop.permute.xlu0 %1003
  %v1006 = vmul.f32 %v999, %v1004
  %1008 = vrot.lane.b32.xlu0 %v1006, 32
  %v1009 = vpop.permute.xlu0 %1008
  %v1011 = vadd.f32 %v1001, %v1009
  %v1012 = vtanh.pop %v1011
  %1014 = vrot.lane.b32.xlu0 %v1012, 64
  %v1015 = vpop.permute.xlu0 %1014
  %v1017 = vmul.f32 %v999, %v1015
  %1019 = vrot.lane.b32.xlu0 %v1017, 32
  %v1020 = vpop.permute.xlu0 %1019
  %1022 = vst.msk [vmem:[#allocation3 + $0x38] sm:$0xff] %vm194, %v1020
  %1023 = vst.msk [vmem:[%s9] sm:$0xff] %vm194, %v1020
  %1025 = vrot.lane.b32.xlu0 %v1011, 96
  %v1026 = vpop.permute.xlu0 %1025
  %1028 = vst.msk [vmem:[%s10] sm:$0xff] %vm194, %v1026
  %v1029 = vld [vmem:[#allocation3] sm:$0xff]
  %v1030 = vld [vmem:[#allocation3 + $0x8] sm:$0xff]
  %v1031 = vld [vmem:[#allocation3 + $0x10] sm:$0xff]
  %v1032 = vld [vmem:[#allocation3 + $0x18] sm:$0xff]
  %v1033 = vld [vmem:[#allocation3 + $0x20] sm:$0xff]
  %v1034 = vld [vmem:[#allocation3 + $0x28] sm:$0xff]
  %v1035 = vld [vmem:[#allocation3 + $0x30] sm:$0xff]
  %v1036 = vld [vmem:[#allocation3 + $0x38] sm:$0xff]
  %v1037 = vld [vmem:[%s6] sm:$0xff]
  %v1038 = vld [vmem:[%s6 + $0x8] sm:$0xff]
  %v1039 = vld [vmem:[%s6 + $0x10] sm:$0xff]
  %v1040 = vld [vmem:[%s6 + $0x18] sm:$0xff]
  %v1041 = vld [vmem:[%s7] sm:$0x1]
  %v1043 = vlaneseq
  %v1044 = vshrl.u32 %v1043, 7
  %v1045 = vsub.s32 0, %v1044
  %v1046 = vrot.slane %v1041, %v1045
  %v1049 = vsel %vm194, %v1029, 0
  %v1052 = vsel %vm194, %v1030, 0
  %v1055 = vsel %vm194, %v1031, 0
  %v1058 = vsel %vm194, %v1032, 0
  %v1061 = vsel %vm194, %v1033, 0
  %v1064 = vsel %vm194, %v1034, 0
  %v1067 = vsel %vm194, %v1035, 0
  %v1070 = vsel %vm194, %v1036, 0
  %1072 = vmatprep.subr.mxu0 0.0
  %1073 = vmatpush1.msra.mxu0 %v1037
  %1074 = vmatprep.subr.mxu0 0.0
  %1075 = vmatpush1.msra.mxu0 %v1038
  %1076 = vmatprep.subr.mxu0 0.0
  %1077 = vmatpush1.msra.mxu0 %v1039
  %1078 = vmatprep.subr.mxu0 0.0
  %1079 = vmatpush1.msra.mxu0 %v1040
  %1080 = vmatprep.subr.mxu0 0.0
  %1081 = vmatpush1.msra.mxu0 0.0
  %1082 = vmatprep.subr.mxu0 0.0
  %1083 = vmatpush1.msra.mxu0 0.0
  %1084 = vmatprep.subr.mxu0 0.0
  %1085 = vmatpush1.msra.mxu0 0.0
  %1086 = vmatprep.subr.mxu0 0.0
  %1087 = vmatpush1.msra.mxu0 0.0
  %1088 = vmatprep.subr.mxu0 0.0
  %1089 = vmatpush1.msra.mxu0 0.0
  %1090 = vmatprep.subr.mxu0 0.0
  %1091 = vmatpush1.msra.mxu0 0.0
  %1092 = vmatprep.subr.mxu0 0.0
  %1093 = vmatpush1.msra.mxu0 0.0
  %1094 = vmatprep.subr.mxu0 0.0
  %1095 = vmatpush1.msra.mxu0 0.0
  %1096 = vmatprep.subr.mxu0 0.0
  %1097 = vmatpush1.msra.mxu0 0.0
  %1098 = vmatprep.subr.mxu0 0.0
  %1099 = vmatpush1.msra.mxu0 0.0
  %1100 = vmatprep.subr.mxu0 0.0
  %1101 = vmatpush1.msra.mxu0 0.0
  %1102 = vmatprep.subr.mxu0 0.0
  %1103 = vmatpush1.msra.mxu0 0.0
  %1104 = vmatprep.subr.mxu0 0.0
  %1105 = vmatpush1.msra.mxu0 0.0
  %1106 = vmatprep.subr.mxu0 0.0
  %1107 = vmatpush1.msra.mxu0 0.0
  %1108 = vmatprep.subr.mxu0 0.0
  %1109 = vmatpush1.msra.mxu0 0.0
  %1110 = vmatprep.subr.mxu0 0.0
  %1111 = vmatpush1.msra.mxu0 0.0
  %1112 = vmatprep.subr.mxu0 0.0
  %1113 = vmatpush1.msra.mxu0 0.0
  %1114 = vmatprep.subr.mxu0 0.0
  %1115 = vmatpush1.msra.mxu0 0.0
  %1116 = vmatprep.subr.mxu0 0.0
  %1117 = vmatpush1.msra.mxu0 0.0
  %1118 = vmatprep.subr.mxu0 0.0
  %1119 = vmatpush1.msra.mxu0 0.0
  %1120 = vmatprep.subr.mxu0 0.0
  %1121 = vmatpush1.msra.mxu0 0.0
  %1122 = vmatprep.subr.mxu0 0.0
  %1123 = vmatpush1.msra.mxu0 0.0
  %1124 = vmatprep.subr.mxu0 0.0
  %1125 = vmatpush1.msra.mxu0 0.0
  %1126 = vmatprep.subr.mxu0 0.0
  %1127 = vmatpush1.msra.mxu0 0.0
  %1128 = vmatprep.subr.mxu0 0.0
  %1129 = vmatpush1.msra.mxu0 0.0
  %1130 = vmatprep.subr.mxu0 0.0
  %1131 = vmatpush1.msra.mxu0 0.0
  %1132 = vmatprep.subr.mxu0 0.0
  %1133 = vmatpush1.msra.mxu0 0.0
  %1134 = vmatprep.subr.mxu0 0.0
  %1135 = vmatpush1.msra.mxu0 0.0
  %1136 = vmatprep.mubr.f32.mxu0 0.0
  %1137 = vmatmul.mubr.f32.gmra.mrb[0].mxu0 %v1049
  %v1138 = vpop.f32.mrb[0].mxu0
  %v1139 = vadd.f32 %v1046, %v1138
  %v1140 = vpop.f32.mrb[0].mxu0
  %1141 = vmatprep.mubr.f32.mxu0 0.0
  %1142 = vmatmul.mubr.f32.gmra.mrb[0].mxu0 %v1052
  %v1143 = vpop.f32.mrb[0].mxu0
  %v1144 = vadd.f32 %v1046, %v1143
  %v1145 = vpop.f32.mrb[0].mxu0
  %1146 = vmatprep.mubr.f32.mxu0 0.0
  %1147 = vmatmul.mubr.f32.gmra.mrb[0].mxu0 %v1055
  %v1148 = vpop.f32.mrb[0].mxu0
  %v1149 = vadd.f32 %v1046, %v1148
  %v1150 = vpop.f32.mrb[0].mxu0
  %1151 = vmatprep.mubr.f32.mxu0 0.0
  %1152 = vmatmul.mubr.f32.gmra.mrb[0].mxu0 %v1058
  %v1153 = vpop.f32.mrb[0].mxu0
  %v1154 = vadd.f32 %v1046, %v1153
  %v1155 = vpop.f32.mrb[0].mxu0
  %1156 = vmatprep.mubr.f32.mxu0 0.0
  %1157 = vmatmul.mubr.f32.gmra.mrb[0].mxu0 %v1061
  %v1158 = vpop.f32.mrb[0].mxu0
  %v1159 = vadd.f32 %v1046, %v1158
  %v1160 = vpop.f32.mrb[0].mxu0
  %1161 = vmatprep.mubr.f32.mxu0 0.0
  %1162 = vmatmul.mubr.f32.gmra.mrb[0].mxu0 %v1064
  %v1163 = vpop.f32.mrb[0].mxu0
  %v1164 = vadd.f32 %v1046, %v1163
  %v1165 = vpop.f32.mrb[0].mxu0
  %1166 = vmatprep.mubr.f32.mxu0 0.0
  %1167 = vmatmul.mubr.f32.gmra.mrb[0].mxu0 %v1067
  %v1168 = vpop.f32.mrb[0].mxu0
  %v1169 = vadd.f32 %v1046, %v1168
  %v1170 = vpop.f32.mrb[0].mxu0
  %1171 = vmatprep.mubr.f32.mxu0 0.0
  %1172 = vmatmul.mubr.f32.gmra.mrb[0].mxu0 %v1070
  %v1173 = vpop.f32.mrb[0].mxu0
  %v1174 = vadd.f32 %v1046, %v1173
  %v1175 = vpop.f32.mrb[0].mxu0
  %1176 = vdwg.mxu0
  %v1177 = vtanh.pop %v1139
  %v1178 = vtanh.pop %v1144
  %v1179 = vtanh.pop %v1149
  %v1180 = vtanh.pop %v1154
  %v1181 = vtanh.pop %v1159
  %v1182 = vtanh.pop %v1164
  %v1183 = vtanh.pop %v1169
  %v1184 = vtanh.pop %v1174
  %vm1185 = vcmask 31744
  %1186 = vst.msk [vmem:[%s8] sm:$0xff] %vm1185, %v1177
  %1187 = vst.msk [vmem:[%s8 + $0x8] sm:$0xff] %vm1185, %v1178
  %1188 = vst.msk [vmem:[%s8 + $0x10] sm:$0xff] %vm1185, %v1179
  %1189 = vst.msk [vmem:[%s8 + $0x18] sm:$0xff] %vm1185, %v1180
  %1190 = vst.msk [vmem:[%s8 + $0x20] sm:$0xff] %vm1185, %v1181
  %1191 = vst.msk [vmem:[%s8 + $0x28] sm:$0xff] %vm1185, %v1182
  %1192 = vst.msk [vmem:[%s8 + $0x30] sm:$0xff] %vm1185, %v1183
  %1193 = vst.msk [vmem:[%s8 + $0x38] sm:$0xff] %vm1185, %v1184
  // Predicated region
  $region34: #{recurrent_policy_forward.1} parent=0 // pred_check
    _
  $region35: #{recurrent_policy_forward.1} parent=0 // pred_check_branch
    %1195 = sbr.rel (0) target = $region37
  $region36: #{recurrent_policy_forward.1} parent=0 // pred_region
    _
  $region37: #{recurrent_policy_forward.1} parent=0 // pred_fallthru
    _
  // Predicated region
  $region38: #{recurrent_policy_forward.1} parent=0 // pred_check
    _
  $region39: #{recurrent_policy_forward.1} parent=0 // pred_check_branch
    %1197 = sbr.rel (0) target = $region41
  $region40: #{recurrent_policy_forward.1} parent=0 // pred_region
    _
  $region41: #{recurrent_policy_forward.1} parent=0 // pred_fallthru
    _
  // Predicated region
  $region42: #{recurrent_policy_forward.1} parent=0 // pred_check
    _
  $region43: #{recurrent_policy_forward.1} parent=0 // pred_check_branch
    %1199 = sbr.rel (0) target = $region45
  $region44: #{recurrent_policy_forward.1} parent=0 // pred_region
    _
  $region45: #{recurrent_policy_forward.1} parent=0 // pred_fallthru
    _
  // Predicated region
  $region46: #{recurrent_policy_forward.1} parent=0 // pred_check
    _
  $region47: #{recurrent_policy_forward.1} parent=0 // pred_check_branch
    %1201 = sbr.rel (0) target = $region49
  $region48: #{recurrent_policy_forward.1} parent=0 // pred_region
    _
  $region49: #{recurrent_policy_forward.1} parent=0 // pred_fallthru
    _
  // Predicated region
  $region50: #{recurrent_policy_forward.1} parent=0 // pred_check
    _
  $region51: #{recurrent_policy_forward.1} parent=0 // pred_check_branch
    %1203 = sbr.rel (0) target = $region53
  $region52: #{recurrent_policy_forward.1} parent=0 // pred_region
    _
  $region53: #{recurrent_policy_forward.1} parent=0 // pred_fallthru
    _
  // Predicated region
  $region54: #{recurrent_policy_forward.1} parent=0 // pred_check
    _
  $region55: #{recurrent_policy_forward.1} parent=0 // pred_check_branch
    %1205 = sbr.rel (0) target = $region57
  $region56: #{recurrent_policy_forward.1} parent=0 // pred_region
    _
  $region57: #{recurrent_policy_forward.1} parent=0 // pred_fallthru
    _

</llo_original>
